<compile_context>
chip_gen: v7x
topology: tpu7x:2x2x1
jax: 0.10.0
libtpu: 0.0.40
codegen_flags: <defaults>
</compile_context>

<pallas_src>
import functools

import jax
import jax.numpy as jnp
from jax.experimental import pallas as pl
from jax.experimental.pallas import tpu as pltpu

_EPS = 1e-5  # nn.GroupNorm default eps


# ---------------------------------------------------------------------------
# in-kernel GroupNorm (channels on sublanes, pixels on lanes)
# ---------------------------------------------------------------------------
def _group_norm_t(acc, gamma, beta, gmat, lane_mask):
    """acc: (C, N) f32.  gamma/beta: (C, 1).  gmat: (C, C) group membership
    with 1/(H*W*C//G) folded in.  lane_mask: (1, N), 1.0 on real image pixels.
    Two-pass (centered) statistics."""
    csum = jnp.sum(acc * lane_mask, axis=1, keepdims=True)              # (C, 1)
    gmean = jnp.dot(gmat, csum, preferred_element_type=jnp.float32)     # (C, 1)
    centered = acc - gmean
    csq = jnp.sum(centered * centered * lane_mask, axis=1, keepdims=True)
    gvar = jnp.dot(gmat, csq, preferred_element_type=jnp.float32)
    return centered * jax.lax.rsqrt(gvar + _EPS) * gamma + beta


# ---------------------------------------------------------------------------
# fused kernel: conv1+GN1+FiLM+ReLU -> conv2+GN2+ReLU -> + conv1x1(x)
# ---------------------------------------------------------------------------
def _mini_res_kernel(xe_ref, sp1_ref, off_ref, m1_ref, m2_ref, gmat_ref,
                     w1_ref, b1_ref, g1_ref, be1_ref,
                     w2_ref, b2_ref, g2_ref, be2_ref,
                     w3_ref, b3_ref, o_ref, *, H, W):
    C, nband = o_ref.shape                       # nband = H * (W + 4)
    Wp = W + 4                                   # width of the 2-padded grid
    np2 = (H + 4) * Wp                           # pixels of the 2-padded grid
    ext = Wp + 1                                 # flat halo so all taps stay in-bounds
    r_lo = 2 * Wp                                # first flat row of the output band

    xe = xe_ref[...]                             # (Cin_p, np2 + 2*ext) f32, flat CHW
    m1 = m1_ref[...]                             # (1, np2)   real-pixel mask
    m2 = m2_ref[...]                             # (1, nband) real-pixel mask
    gmat = gmat_ref[...]                         # (C, C)     group pooling matrix

    def taps(src, base, n):
        # 9 taps of a 3x3 conv = lane-shifted views of the flattened image,
        # stacked along sublanes -> (9*rows(src), n).
        def one(dy, dx):
            s = base + (dy - 1) * Wp + (dx - 1)
            return src[:, s:s + n]
        return jnp.concatenate([one(dy, dx) for dy in range(3) for dx in range(3)],
                               axis=0)

    # ---- conv1 (single MXU pass, bf16 operands, f32 accumulation) ----------
    p1 = taps(xe, ext, np2)                                        # (9*Cin_p, np2)
    acc1 = jnp.dot(w1_ref[...], p1.astype(jnp.bfloat16),
                   preferred_element_type=jnp.float32) + b1_ref[...]

    # ---- GroupNorm1 + FiLM + ReLU; zero the halo so conv2 sees SAME padding -
    y1 = _group_norm_t(acc1, g1_ref[...], be1_ref[...], gmat, m1)
    h = m1 * jnp.maximum(sp1_ref[...] * y1 + off_ref[...], 0.0)    # (C, np2)

    # ---- conv2 on the on-chip h (never touches HBM) ------------------------
    p2 = taps(h, r_lo, nband)                                      # (9*C, nband)
    acc2 = jnp.dot(w2_ref[...], p2.astype(jnp.bfloat16),
                   preferred_element_type=jnp.float32) + b2_ref[...]
    y2 = jnp.maximum(_group_norm_t(acc2, g2_ref[...], be2_ref[...], gmat, m2), 0.0)

    # ---- 1x1 residual conv on the original x -------------------------------
    xres = xe[:, ext + r_lo: ext + r_lo + nband]                   # (Cin_p, nband)
    res = jnp.dot(w3_ref[...], xres.astype(jnp.bfloat16),
                  preferred_element_type=jnp.float32) + b3_ref[...]

    o_ref[...] = y2 + res                                          # lane-dense store


# ---------------------------------------------------------------------------
# wrapper
# ---------------------------------------------------------------------------
def mini_res_forward(x_nchw, time_embed, params, *, num_groups=8):
    x = x_nchw.astype(jnp.float32)
    B, Cin, H, W = x.shape
    C = params["b1"].shape[-1]
    assert C % num_groups == 0, "out_channels must be divisible by num_groups"
    cpg = C // num_groups

    cin_p = ((Cin + 7) // 8) * 8            # pad input channels to a sublane multiple
    Hp, Wp = H + 4, W + 4
    np2 = Hp * Wp
    ext = Wp + 1
    next_ = np2 + 2 * ext
    nband = H * Wp

    # channel-padded, spatially 2-padded, flattened (CHW) image with a flat halo
    xpc = jnp.pad(x, ((0, 0), (0, cin_p - Cin), (2, 2), (2, 2)))
    xe = jnp.pad(xpc.reshape(B, cin_p, np2), ((0, 0), (0, 0), (ext, ext)))

    # FiLM mlp (ReLU -> Linear) done once in XLA; identity when no time embedding
    if time_embed is not None and params.get("wm") is not None:
        so = jnp.maximum(time_embed.astype(jnp.float32), 0.0) @ params["wm"] + params["bm"]
        sp1 = (so[:, :C] + 1.0).reshape(B, C, 1)
        off = so[:, C:].reshape(B, C, 1)
    else:
        sp1 = jnp.ones((B, C, 1), jnp.float32)
        off = jnp.zeros((B, C, 1), jnp.float32)

    # lane masks marking which flattened pixels are real image pixels
    p = jnp.arange(np2)
    m1 = (((p // Wp >= 2) & (p // Wp <= H + 1) & (p % Wp >= 2) & (p % Wp <= W + 1))
          .astype(jnp.float32).reshape(1, np2))
    q = jnp.arange(nband)
    m2 = ((q % Wp >= 2) & (q % Wp <= W + 1)).astype(jnp.float32).reshape(1, nband)

    # group-membership pooling matrix with 1/n folded in (n = H*W*(C//G))
    gid = jnp.arange(C) // cpg
    gmat = (gid[:, None] == gid[None, :]).astype(jnp.float32) / float(H * W * cpg)

    # weights packed as (Cout, K) for the channels-x-pixels matmuls, stored bf16
    w1 = jnp.pad(jnp.transpose(params["w1_hwio"], (3, 0, 1, 2)),
                 ((0, 0), (0, 0), (0, 0), (0, cin_p - Cin)))
    w1 = w1.reshape(C, 9 * cin_p).astype(jnp.bfloat16)
    w2 = jnp.transpose(params["w2_hwio"], (3, 0, 1, 2)).reshape(C, 9 * C).astype(jnp.bfloat16)
    w3 = jnp.pad(params["w3"].T, ((0, 0), (0, cin_p - Cin))).astype(jnp.bfloat16)

    col = lambda a: a.reshape(C, 1).astype(jnp.float32)

    full = lambda s: pl.BlockSpec(s, lambda b: (0,) * len(s))
    per_img = lambda s: pl.BlockSpec((pl.Squeezed(),) + tuple(s),
                                     lambda b: (b,) + (0,) * len(s))

    flops = 2 * B * C * (9 * cin_p * np2 + 9 * C * nband + cin_p * nband)
    bytes_accessed = (4 * (B * cin_p * next_ + B * C * nband + 2 * B * C
                           + np2 + nband + C * C + 7 * C)
                      + 2 * C * (9 * cin_p + 9 * C + cin_p))

    out = pl.pallas_call(
        functools.partial(_mini_res_kernel, H=H, W=W),
        grid=(B,),
        in_specs=[
            per_img((cin_p, next_)),
            per_img((C, 1)), per_img((C, 1)),
            full((1, np2)), full((1, nband)), full((C, C)),
            full((C, 9 * cin_p)), full((C, 1)), full((C, 1)), full((C, 1)),
            full((C, 9 * C)), full((C, 1)), full((C, 1)), full((C, 1)),
            full((C, cin_p)), full((C, 1)),
        ],
        out_specs=per_img((C, nband)),
        out_shape=jax.ShapeDtypeStruct((B, C, nband), jnp.float32),
        compiler_params=pltpu.CompilerParams(
            dimension_semantics=("parallel",),
            vmem_limit_bytes=32 * 1024 * 1024),
        cost_estimate=pl.CostEstimate(flops=flops, transcendentals=2 * B * C,
                                      bytes_accessed=bytes_accessed),
    )(xe, sp1, off, m1, m2, gmat,
      w1, col(params["b1"]), col(params["g1"]), col(params["be1"]),
      w2, col(params["b2"]), col(params["g2"]), col(params["be2"]),
      w3, col(params["b3"]))

    # output is already channels-first: un-flatten and strip the width halo
    return out.reshape(B, C, H, Wp)[:, :, :, 2:W + 2]


# ---------------------------------------------------------------------------
# deterministic parameter init (synthetic, matches module shapes)
# ---------------------------------------------------------------------------
def init_params(key, cin, cout, t, scale=0.1):
    ks = jax.random.split(key, 12)
    return {
        "w1_hwio": scale * jax.random.normal(ks[0], (3, 3, cin, cout), jnp.float32),
        "b1": scale * jax.random.normal(ks[1], (cout,), jnp.float32),
        "g1": 1.0 + scale * jax.random.normal(ks[2], (cout,), jnp.float32),
        "be1": scale * jax.random.normal(ks[3], (cout,), jnp.float32),
        "w2_hwio": scale * jax.random.normal(ks[4], (3, 3, cout, cout), jnp.float32),
        "b2": scale * jax.random.normal(ks[5], (cout,), jnp.float32),
        "g2": 1.0 + scale * jax.random.normal(ks[6], (cout,), jnp.float32),
        "be2": scale * jax.random.normal(ks[7], (cout,), jnp.float32),
        "w3": scale * jax.random.normal(ks[8], (cin, cout), jnp.float32),
        "b3": scale * jax.random.normal(ks[9], (cout,), jnp.float32),
        "wm": scale * jax.random.normal(ks[10], (t, 2 * cout), jnp.float32),
        "bm": scale * jax.random.normal(ks[11], (2 * cout,), jnp.float32),
    }


# ---------------------------------------------------------------------------
# pure-JAX (f32) reference for correctness check
# ---------------------------------------------------------------------------
def ref_forward(x_nchw, te, p, *, num_groups=8):
    x = jnp.transpose(x_nchw, (0, 2, 3, 1)).astype(jnp.float32)

    def conv3x3(v, w, b):
        return jax.lax.conv_general_dilated(
            v, w, (1, 1), "SAME",
            dimension_numbers=("NHWC", "HWIO", "NHWC")) + b

    def gn(v, gamma, beta):
        B, H, W, C = v.shape
        g = num_groups
        vr = v.reshape(B, H, W, g, C // g)
        m = vr.mean(axis=(1, 2, 4), keepdims=True)
        var = ((vr - m) ** 2).mean(axis=(1, 2, 4), keepdims=True)
        vn = (vr - m) / jnp.sqrt(var + _EPS)
        return vn.reshape(B, H, W, C) * gamma + beta

    C = p["w1_hwio"].shape[-1]
    h = gn(conv3x3(x, p["w1_hwio"], p["b1"]), p["g1"], p["be1"])
    if te is not None:
        so = jnp.maximum(te.astype(jnp.float32), 0.0) @ p["wm"] + p["bm"]
        h = (so[:, None, None, :C] + 1.0) * h + so[:, None, None, C:]
    h = jnp.maximum(h, 0.0)
    h = jnp.maximum(gn(conv3x3(h, p["w2_hwio"], p["b2"]), p["g2"], p["be2"]), 0.0)
    res = x @ p["w3"] + p["b3"]
    return jnp.transpose(h + res, (0, 3, 1, 2))


def _check(a, b, name):
    # tolerances account for bf16 MXU operands (f32 accumulation) in the kernel
    max_err = float(jnp.max(jnp.abs(a - b)))
    rel = float(jnp.sqrt(jnp.sum((a - b) ** 2)) / (jnp.sqrt(jnp.sum(b ** 2)) + 1e-12))
    assert max_err < 6e-2 and rel < 1.5e-2, (name, max_err, rel)


if __name__ == "__main__":
    B, Cin, Cout, H, W, T, G = 2, 4, 16, 16, 16, 32, 8
    key = jax.random.PRNGKey(0)
    kx, kt, kp = jax.random.split(key, 3)
    x = jax.random.normal(kx, (B, Cin, H, W), jnp.float32)   # NCHW, like PyTorch
    te = jax.random.normal(kt, (B, T), jnp.float32)
    params = init_params(kp, Cin, Cout, T)

    out = jax.block_until_ready(mini_res_forward(x, te, params, num_groups=G))
    assert out.shape == (B, Cout, H, W)
    _check(out, ref_forward(x, te, params, num_groups=G), "with_time_embed")

    out_nt = jax.block_until_ready(mini_res_forward(x, None, params, num_groups=G))
    _check(out_nt, ref_forward(x, None, params, num_groups=G), "no_time_embed")

    print("KERNEL_OK")
</pallas_src>

<mosaic_0001>
module attributes {stable_mosaic.version = 11 : i64} {
  func.func @_mini_res_kernel(%arg0: i32, %arg1: memref<1x8x442xf32, #tpu.memory_space<vmem>>, %arg2: memref<1x16x1xf32, #tpu.memory_space<vmem>>, %arg3: memref<1x16x1xf32, #tpu.memory_space<vmem>>, %arg4: memref<1x400xf32, #tpu.memory_space<vmem>>, %arg5: memref<1x320xf32, #tpu.memory_space<vmem>>, %arg6: memref<16x16xf32, #tpu.memory_space<vmem>>, %arg7: memref<16x72xbf16, #tpu.memory_space<vmem>>, %arg8: memref<16x1xf32, #tpu.memory_space<vmem>>, %arg9: memref<16x1xf32, #tpu.memory_space<vmem>>, %arg10: memref<16x1xf32, #tpu.memory_space<vmem>>, %arg11: memref<16x144xbf16, #tpu.memory_space<vmem>>, %arg12: memref<16x1xf32, #tpu.memory_space<vmem>>, %arg13: memref<16x1xf32, #tpu.memory_space<vmem>>, %arg14: memref<16x1xf32, #tpu.memory_space<vmem>>, %arg15: memref<16x8xbf16, #tpu.memory_space<vmem>>, %arg16: memref<16x1xf32, #tpu.memory_space<vmem>>, %arg17: memref<1x16x320xf32, #tpu.memory_space<vmem>>) attributes {dimension_semantics = [#tpu.dimension_semantics<parallel>], iteration_bounds = array<i64: 2>, scalar_prefetch = 0 : i64, scratch_operands = 0 : i64, tpu.core_type = #tpu.core_type<tc>, window_params = [{transform_indices = @transform_0, window_bounds = array<i64: 1, 8, 442>}, {transform_indices = @transform_1, window_bounds = array<i64: 1, 16, 1>}, {transform_indices = @transform_2, window_bounds = array<i64: 1, 16, 1>}, {pipeline_mode = #tpu.pipeline_mode<synchronous>, transform_indices = @transform_3, window_bounds = array<i64: 1, 400>}, {pipeline_mode = #tpu.pipeline_mode<synchronous>, transform_indices = @transform_4, window_bounds = array<i64: 1, 320>}, {pipeline_mode = #tpu.pipeline_mode<synchronous>, transform_indices = @transform_5, window_bounds = array<i64: 16, 16>}, {pipeline_mode = #tpu.pipeline_mode<synchronous>, transform_indices = @transform_6, window_bounds = array<i64: 16, 72>}, {pipeline_mode = #tpu.pipeline_mode<synchronous>, transform_indices = @transform_7, window_bounds = array<i64: 16, 1>}, {pipeline_mode = #tpu.pipeline_mode<synchronous>, transform_indices = @transform_8, window_bounds = array<i64: 16, 1>}, {pipeline_mode = #tpu.pipeline_mode<synchronous>, transform_indices = @transform_9, window_bounds = array<i64: 16, 1>}, {pipeline_mode = #tpu.pipeline_mode<synchronous>, transform_indices = @transform_10, window_bounds = array<i64: 16, 144>}, {pipeline_mode = #tpu.pipeline_mode<synchronous>, transform_indices = @transform_11, window_bounds = array<i64: 16, 1>}, {pipeline_mode = #tpu.pipeline_mode<synchronous>, transform_indices = @transform_12, window_bounds = array<i64: 16, 1>}, {pipeline_mode = #tpu.pipeline_mode<synchronous>, transform_indices = @transform_13, window_bounds = array<i64: 16, 1>}, {pipeline_mode = #tpu.pipeline_mode<synchronous>, transform_indices = @transform_14, window_bounds = array<i64: 16, 8>}, {pipeline_mode = #tpu.pipeline_mode<synchronous>, transform_indices = @transform_15, window_bounds = array<i64: 16, 1>}, {transform_indices = @transform_16, window_bounds = array<i64: 1, 16, 320>}]} {
    %c0 = arith.constant 0 : index
    %c0_0 = arith.constant 0 : index
    %c0_1 = arith.constant 0 : index
    %0 = vector.load %arg1[%c0, %c0_0, %c0_1] : memref<1x8x442xf32, #tpu.memory_space<vmem>>, vector<1x8x442xf32>
    %1 = vector.shape_cast %0 : vector<1x8x442xf32> to vector<8x442xf32>
    %c0_2 = arith.constant 0 : index
    %c0_3 = arith.constant 0 : index
    %2 = vector.load %arg4[%c0_2, %c0_3] : memref<1x400xf32, #tpu.memory_space<vmem>>, vector<1x400xf32>
    %c0_4 = arith.constant 0 : index
    %c0_5 = arith.constant 0 : index
    %3 = vector.load %arg5[%c0_4, %c0_5] : memref<1x320xf32, #tpu.memory_space<vmem>>, vector<1x320xf32>
    %c0_6 = arith.constant 0 : index
    %c0_7 = arith.constant 0 : index
    %4 = vector.load %arg6[%c0_6, %c0_7] : memref<16x16xf32, #tpu.memory_space<vmem>>, vector<16x16xf32>
    %5 = vector.extract_strided_slice %1 {offsets = [0, 0], sizes = [8, 400], strides = [1, 1]} : vector<8x442xf32> to vector<8x400xf32>
    %6 = vector.extract_strided_slice %1 {offsets = [0, 1], sizes = [8, 400], strides = [1, 1]} : vector<8x442xf32> to vector<8x400xf32>
    %7 = vector.extract_strided_slice %1 {offsets = [0, 2], sizes = [8, 400], strides = [1, 1]} : vector<8x442xf32> to vector<8x400xf32>
    %8 = vector.extract_strided_slice %1 {offsets = [0, 20], sizes = [8, 400], strides = [1, 1]} : vector<8x442xf32> to vector<8x400xf32>
    %9 = vector.extract_strided_slice %1 {offsets = [0, 21], sizes = [8, 400], strides = [1, 1]} : vector<8x442xf32> to vector<8x400xf32>
    %10 = vector.extract_strided_slice %1 {offsets = [0, 22], sizes = [8, 400], strides = [1, 1]} : vector<8x442xf32> to vector<8x400xf32>
    %11 = vector.extract_strided_slice %1 {offsets = [0, 40], sizes = [8, 400], strides = [1, 1]} : vector<8x442xf32> to vector<8x400xf32>
    %12 = vector.extract_strided_slice %1 {offsets = [0, 41], sizes = [8, 400], strides = [1, 1]} : vector<8x442xf32> to vector<8x400xf32>
    %13 = vector.extract_strided_slice %1 {offsets = [0, 42], sizes = [8, 400], strides = [1, 1]} : vector<8x442xf32> to vector<8x400xf32>
    %14 = tpu.concatenate %5, %6, %7, %8, %9, %10, %11, %12, %13 in 0 : vector<8x400xf32>, vector<8x400xf32>, vector<8x400xf32>, vector<8x400xf32>, vector<8x400xf32>, vector<8x400xf32>, vector<8x400xf32>, vector<8x400xf32>, vector<8x400xf32> -> vector<72x400xf32>
    %c0_8 = arith.constant 0 : index
    %c0_9 = arith.constant 0 : index
    %15 = vector.load %arg7[%c0_8, %c0_9] : memref<16x72xbf16, #tpu.memory_space<vmem>>, vector<16x72xbf16>
    %16 = arith.truncf %14 : vector<72x400xf32> to vector<72x400xbf16>
    %cst = arith.constant dense<0.000000e+00> : vector<16x400xf32>
    %17 = tpu.matmul %15, %16, %cst {dimension_numbers = #tpu.dot_dimension_numbers<[1], [0], [0], [1], [0, 0, 1, 1], [], []>} : vector<16x72xbf16>, vector<72x400xbf16>, vector<16x400xf32> -> vector<16x400xf32>
    %c0_10 = arith.constant 0 : index
    %c0_11 = arith.constant 0 : index
    %18 = vector.load %arg8[%c0_10, %c0_11] : memref<16x1xf32, #tpu.memory_space<vmem>>, vector<16x1xf32>
    %19 = vector.broadcast %18 : vector<16x1xf32> to vector<16x400xf32>
    %20 = arith.addf %17, %19 : vector<16x400xf32>
    %c0_12 = arith.constant 0 : index
    %c0_13 = arith.constant 0 : index
    %21 = vector.load %arg9[%c0_12, %c0_13] : memref<16x1xf32, #tpu.memory_space<vmem>>, vector<16x1xf32>
    %c0_14 = arith.constant 0 : index
    %c0_15 = arith.constant 0 : index
    %22 = vector.load %arg10[%c0_14, %c0_15] : memref<16x1xf32, #tpu.memory_space<vmem>>, vector<16x1xf32>
    %23 = vector.broadcast %2 : vector<1x400xf32> to vector<16x400xf32>
    %24 = arith.mulf %20, %23 : vector<16x400xf32>
    %cst_16 = arith.constant dense<0.000000e+00> : vector<16xf32>
    %25 = vector.multi_reduction <add>, %24, %cst_16 [1] : vector<16x400xf32> to vector<16xf32>
    %26 = vector.shape_cast %25 : vector<16xf32> to vector<16x1xf32>
    %cst_17 = arith.constant dense<0.000000e+00> : vector<16x1xf32>
    %27 = tpu.matmul %4, %26, %cst_17 {dimension_numbers = #tpu.dot_dimension_numbers<[1], [0], [0], [1], [0, 0, 1, 1], [], []>} : vector<16x16xf32>, vector<16x1xf32>, vector<16x1xf32> -> vector<16x1xf32>
    %28 = vector.broadcast %27 : vector<16x1xf32> to vector<16x400xf32>
    %29 = arith.subf %20, %28 : vector<16x400xf32>
    %30 = arith.mulf %29, %29 : vector<16x400xf32>
    %31 = vector.broadcast %2 : vector<1x400xf32> to vector<16x400xf32>
    %32 = arith.mulf %30, %31 : vector<16x400xf32>
    %cst_18 = arith.constant dense<0.000000e+00> : vector<16xf32>
    %33 = vector.multi_reduction <add>, %32, %cst_18 [1] : vector<16x400xf32> to vector<16xf32>
    %34 = vector.shape_cast %33 : vector<16xf32> to vector<16x1xf32>
    %cst_19 = arith.constant dense<0.000000e+00> : vector<16x1xf32>
    %35 = tpu.matmul %4, %34, %cst_19 {dimension_numbers = #tpu.dot_dimension_numbers<[1], [0], [0], [1], [0, 0, 1, 1], [], []>} : vector<16x16xf32>, vector<16x1xf32>, vector<16x1xf32> -> vector<16x1xf32>
    %cst_20 = arith.constant 9.99999974E-6 : f32
    %36 = vector.broadcast %cst_20 : f32 to vector<16x1xf32>
    %37 = arith.addf %35, %36 : vector<16x1xf32>
    %38 = math.rsqrt %37 : vector<16x1xf32>
    %39 = vector.broadcast %38 : vector<16x1xf32> to vector<16x400xf32>
    %40 = arith.mulf %29, %39 : vector<16x400xf32>
    %41 = vector.broadcast %21 : vector<16x1xf32> to vector<16x400xf32>
    %42 = arith.mulf %40, %41 : vector<16x400xf32>
    %43 = vector.broadcast %22 : vector<16x1xf32> to vector<16x400xf32>
    %44 = arith.addf %42, %43 : vector<16x400xf32>
    %c0_21 = arith.constant 0 : index
    %c0_22 = arith.constant 0 : index
    %c0_23 = arith.constant 0 : index
    %45 = vector.load %arg2[%c0_21, %c0_22, %c0_23] : memref<1x16x1xf32, #tpu.memory_space<vmem>>, vector<1x16x1xf32>
    %46 = vector.shape_cast %45 : vector<1x16x1xf32> to vector<16x1xf32>
    %47 = vector.broadcast %46 : vector<16x1xf32> to vector<16x400xf32>
    %48 = arith.mulf %47, %44 : vector<16x400xf32>
    %c0_24 = arith.constant 0 : index
    %c0_25 = arith.constant 0 : index
    %c0_26 = arith.constant 0 : index
    %49 = vector.load %arg3[%c0_24, %c0_25, %c0_26] : memref<1x16x1xf32, #tpu.memory_space<vmem>>, vector<1x16x1xf32>
    %50 = vector.shape_cast %49 : vector<1x16x1xf32> to vector<16x1xf32>
    %51 = vector.broadcast %50 : vector<16x1xf32> to vector<16x400xf32>
    %52 = arith.addf %48, %51 : vector<16x400xf32>
    %cst_27 = arith.constant 0.000000e+00 : f32
    %53 = vector.broadcast %cst_27 : f32 to vector<16x400xf32>
    %54 = arith.maximumf %52, %53 : vector<16x400xf32>
    %55 = vector.broadcast %2 : vector<1x400xf32> to vector<16x400xf32>
    %56 = arith.mulf %55, %54 : vector<16x400xf32>
    %57 = vector.extract_strided_slice %56 {offsets = [0, 19], sizes = [16, 320], strides = [1, 1]} : vector<16x400xf32> to vector<16x320xf32>
    %58 = vector.extract_strided_slice %56 {offsets = [0, 20], sizes = [16, 320], strides = [1, 1]} : vector<16x400xf32> to vector<16x320xf32>
    %59 = vector.extract_strided_slice %56 {offsets = [0, 21], sizes = [16, 320], strides = [1, 1]} : vector<16x400xf32> to vector<16x320xf32>
    %60 = vector.extract_strided_slice %56 {offsets = [0, 39], sizes = [16, 320], strides = [1, 1]} : vector<16x400xf32> to vector<16x320xf32>
    %61 = vector.extract_strided_slice %56 {offsets = [0, 40], sizes = [16, 320], strides = [1, 1]} : vector<16x400xf32> to vector<16x320xf32>
    %62 = vector.extract_strided_slice %56 {offsets = [0, 41], sizes = [16, 320], strides = [1, 1]} : vector<16x400xf32> to vector<16x320xf32>
    %63 = vector.extract_strided_slice %56 {offsets = [0, 59], sizes = [16, 320], strides = [1, 1]} : vector<16x400xf32> to vector<16x320xf32>
    %64 = vector.extract_strided_slice %56 {offsets = [0, 60], sizes = [16, 320], strides = [1, 1]} : vector<16x400xf32> to vector<16x320xf32>
    %65 = vector.extract_strided_slice %56 {offsets = [0, 61], sizes = [16, 320], strides = [1, 1]} : vector<16x400xf32> to vector<16x320xf32>
    %66 = tpu.concatenate %57, %58, %59, %60, %61, %62, %63, %64, %65 in 0 : vector<16x320xf32>, vector<16x320xf32>, vector<16x320xf32>, vector<16x320xf32>, vector<16x320xf32>, vector<16x320xf32>, vector<16x320xf32>, vector<16x320xf32>, vector<16x320xf32> -> vector<144x320xf32>
    %c0_28 = arith.constant 0 : index
    %c0_29 = arith.constant 0 : index
    %67 = vector.load %arg11[%c0_28, %c0_29] : memref<16x144xbf16, #tpu.memory_space<vmem>>, vector<16x144xbf16>
    %68 = arith.truncf %66 : vector<144x320xf32> to vector<144x320xbf16>
    %cst_30 = arith.constant dense<0.000000e+00> : vector<16x320xf32>
    %69 = tpu.matmul %67, %68, %cst_30 {dimension_numbers = #tpu.dot_dimension_numbers<[1], [0], [0], [1], [0, 0, 1, 1], [], []>} : vector<16x144xbf16>, vector<144x320xbf16>, vector<16x320xf32> -> vector<16x320xf32>
    %c0_31 = arith.constant 0 : index
    %c0_32 = arith.constant 0 : index
    %70 = vector.load %arg12[%c0_31, %c0_32] : memref<16x1xf32, #tpu.memory_space<vmem>>, vector<16x1xf32>
    %71 = vector.broadcast %70 : vector<16x1xf32> to vector<16x320xf32>
    %72 = arith.addf %69, %71 : vector<16x320xf32>
    %c0_33 = arith.constant 0 : index
    %c0_34 = arith.constant 0 : index
    %73 = vector.load %arg13[%c0_33, %c0_34] : memref<16x1xf32, #tpu.memory_space<vmem>>, vector<16x1xf32>
    %c0_35 = arith.constant 0 : index
    %c0_36 = arith.constant 0 : index
    %74 = vector.load %arg14[%c0_35, %c0_36] : memref<16x1xf32, #tpu.memory_space<vmem>>, vector<16x1xf32>
    %75 = vector.broadcast %3 : vector<1x320xf32> to vector<16x320xf32>
    %76 = arith.mulf %72, %75 : vector<16x320xf32>
    %cst_37 = arith.constant dense<0.000000e+00> : vector<16xf32>
    %77 = vector.multi_reduction <add>, %76, %cst_37 [1] : vector<16x320xf32> to vector<16xf32>
    %78 = vector.shape_cast %77 : vector<16xf32> to vector<16x1xf32>
    %cst_38 = arith.constant dense<0.000000e+00> : vector<16x1xf32>
    %79 = tpu.matmul %4, %78, %cst_38 {dimension_numbers = #tpu.dot_dimension_numbers<[1], [0], [0], [1], [0, 0, 1, 1], [], []>} : vector<16x16xf32>, vector<16x1xf32>, vector<16x1xf32> -> vector<16x1xf32>
    %80 = vector.broadcast %79 : vector<16x1xf32> to vector<16x320xf32>
    %81 = arith.subf %72, %80 : vector<16x320xf32>
    %82 = arith.mulf %81, %81 : vector<16x320xf32>
    %83 = vector.broadcast %3 : vector<1x320xf32> to vector<16x320xf32>
    %84 = arith.mulf %82, %83 : vector<16x320xf32>
    %cst_39 = arith.constant dense<0.000000e+00> : vector<16xf32>
    %85 = vector.multi_reduction <add>, %84, %cst_39 [1] : vector<16x320xf32> to vector<16xf32>
    %86 = vector.shape_cast %85 : vector<16xf32> to vector<16x1xf32>
    %cst_40 = arith.constant dense<0.000000e+00> : vector<16x1xf32>
    %87 = tpu.matmul %4, %86, %cst_40 {dimension_numbers = #tpu.dot_dimension_numbers<[1], [0], [0], [1], [0, 0, 1, 1], [], []>} : vector<16x16xf32>, vector<16x1xf32>, vector<16x1xf32> -> vector<16x1xf32>
    %cst_41 = arith.constant 9.99999974E-6 : f32
    %88 = vector.broadcast %cst_41 : f32 to vector<16x1xf32>
    %89 = arith.addf %87, %88 : vector<16x1xf32>
    %90 = math.rsqrt %89 : vector<16x1xf32>
    %91 = vector.broadcast %90 : vector<16x1xf32> to vector<16x320xf32>
    %92 = arith.mulf %81, %91 : vector<16x320xf32>
    %93 = vector.broadcast %73 : vector<16x1xf32> to vector<16x320xf32>
    %94 = arith.mulf %92, %93 : vector<16x320xf32>
    %95 = vector.broadcast %74 : vector<16x1xf32> to vector<16x320xf32>
    %96 = arith.addf %94, %95 : vector<16x320xf32>
    %cst_42 = arith.constant 0.000000e+00 : f32
    %97 = vector.broadcast %cst_42 : f32 to vector<16x320xf32>
    %98 = arith.maximumf %96, %97 : vector<16x320xf32>
    %99 = vector.extract_strided_slice %1 {offsets = [0, 61], sizes = [8, 320], strides = [1, 1]} : vector<8x442xf32> to vector<8x320xf32>
    %c0_43 = arith.constant 0 : index
    %c0_44 = arith.constant 0 : index
    %100 = vector.load %arg15[%c0_43, %c0_44] : memref<16x8xbf16, #tpu.memory_space<vmem>>, vector<16x8xbf16>
    %101 = arith.truncf %99 : vector<8x320xf32> to vector<8x320xbf16>
    %cst_45 = arith.constant dense<0.000000e+00> : vector<16x320xf32>
    %102 = tpu.matmul %100, %101, %cst_45 {dimension_numbers = #tpu.dot_dimension_numbers<[1], [0], [0], [1], [0, 0, 1, 1], [], []>} : vector<16x8xbf16>, vector<8x320xbf16>, vector<16x320xf32> -> vector<16x320xf32>
    %c0_46 = arith.constant 0 : index
    %c0_47 = arith.constant 0 : index
    %103 = vector.load %arg16[%c0_46, %c0_47] : memref<16x1xf32, #tpu.memory_space<vmem>>, vector<16x1xf32>
    %104 = vector.broadcast %103 : vector<16x1xf32> to vector<16x320xf32>
    %105 = arith.addf %102, %104 : vector<16x320xf32>
    %106 = arith.addf %98, %105 : vector<16x320xf32>
    %c0_48 = arith.constant 0 : index
    %c0_49 = arith.constant 0 : index
    %c0_50 = arith.constant 0 : index
    %107 = vector.load %arg17[%c0_48, %c0_49, %c0_50] : memref<1x16x320xf32, #tpu.memory_space<vmem>>, vector<1x16x320xf32>
    %108 = vector.shape_cast %107 : vector<1x16x320xf32> to vector<16x320xf32>
    %109 = vector.shape_cast %106 : vector<16x320xf32> to vector<1x16x320xf32>
    tpu.vector_store %arg17[%c0_48, %c0_49, %c0_50], %109 {strides = array<i32>} : memref<1x16x320xf32, #tpu.memory_space<vmem>>, vector<1x16x320xf32>,
    return
  }
  func.func @transform_0(%arg0: i32) -> (i32, i32, i32) {
    %c0_i32 = arith.constant 0 : i32
    %c0_i32_0 = arith.constant 0 : i32
    %c0_i32_1 = arith.constant 0 : i32
    return %arg0, %c0_i32, %c0_i32_0 : i32, i32, i32
  }
  func.func @transform_1(%arg0: i32) -> (i32, i32, i32) {
    %c0_i32 = arith.constant 0 : i32
    %c0_i32_0 = arith.constant 0 : i32
    %c0_i32_1 = arith.constant 0 : i32
    return %arg0, %c0_i32, %c0_i32_0 : i32, i32, i32
  }
  func.func @transform_2(%arg0: i32) -> (i32, i32, i32) {
    %c0_i32 = arith.constant 0 : i32
    %c0_i32_0 = arith.constant 0 : i32
    %c0_i32_1 = arith.constant 0 : i32
    return %arg0, %c0_i32, %c0_i32_0 : i32, i32, i32
  }
  func.func @transform_3(%arg0: i32) -> (i32, i32) {
    %c0_i32 = arith.constant 0 : i32
    %c0_i32_0 = arith.constant 0 : i32
    %c0_i32_1 = arith.constant 0 : i32
    return %c0_i32, %c0_i32_0 : i32, i32
  }
  func.func @transform_4(%arg0: i32) -> (i32, i32) {
    %c0_i32 = arith.constant 0 : i32
    %c0_i32_0 = arith.constant 0 : i32
    %c0_i32_1 = arith.constant 0 : i32
    return %c0_i32, %c0_i32_0 : i32, i32
  }
  func.func @transform_5(%arg0: i32) -> (i32, i32) {
    %c0_i32 = arith.constant 0 : i32
    %c0_i32_0 = arith.constant 0 : i32
    %c0_i32_1 = arith.constant 0 : i32
    return %c0_i32, %c0_i32_0 : i32, i32
  }
  func.func @transform_6(%arg0: i32) -> (i32, i32) {
    %c0_i32 = arith.constant 0 : i32
    %c0_i32_0 = arith.constant 0 : i32
    %c0_i32_1 = arith.constant 0 : i32
    return %c0_i32, %c0_i32_0 : i32, i32
  }
  func.func @transform_7(%arg0: i32) -> (i32, i32) {
    %c0_i32 = arith.constant 0 : i32
    %c0_i32_0 = arith.constant 0 : i32
    %c0_i32_1 = arith.constant 0 : i32
    return %c0_i32, %c0_i32_0 : i32, i32
  }
  func.func @transform_8(%arg0: i32) -> (i32, i32) {
    %c0_i32 = arith.constant 0 : i32
    %c0_i32_0 = arith.constant 0 : i32
    %c0_i32_1 = arith.constant 0 : i32
    return %c0_i32, %c0_i32_0 : i32, i32
  }
  func.func @transform_9(%arg0: i32) -> (i32, i32) {
    %c0_i32 = arith.constant 0 : i32
    %c0_i32_0 = arith.constant 0 : i32
    %c0_i32_1 = arith.constant 0 : i32
    return %c0_i32, %c0_i32_0 : i32, i32
  }
  func.func @transform_10(%arg0: i32) -> (i32, i32) {
    %c0_i32 = arith.constant 0 : i32
    %c0_i32_0 = arith.constant 0 : i32
    %c0_i32_1 = arith.constant 0 : i32
    return %c0_i32, %c0_i32_0 : i32, i32
  }
  func.func @transform_11(%arg0: i32) -> (i32, i32) {
    %c0_i32 = arith.constant 0 : i32
    %c0_i32_0 = arith.constant 0 : i32
    %c0_i32_1 = arith.constant 0 : i32
    return %c0_i32, %c0_i32_0 : i32, i32
  }
  func.func @transform_12(%arg0: i32) -> (i32, i32) {
    %c0_i32 = arith.constant 0 : i32
    %c0_i32_0 = arith.constant 0 : i32
    %c0_i32_1 = arith.constant 0 : i32
    return %c0_i32, %c0_i32_0 : i32, i32
  }
  func.func @transform_13(%arg0: i32) -> (i32, i32) {
    %c0_i32 = arith.constant 0 : i32
    %c0_i32_0 = arith.constant 0 : i32
    %c0_i32_1 = arith.constant 0 : i32
    return %c0_i32, %c0_i32_0 : i32, i32
  }
  func.func @transform_14(%arg0: i32) -> (i32, i32) {
    %c0_i32 = arith.constant 0 : i32
    %c0_i32_0 = arith.constant 0 : i32
    %c0_i32_1 = arith.constant 0 : i32
    return %c0_i32, %c0_i32_0 : i32, i32
  }
  func.func @transform_15(%arg0: i32) -> (i32, i32) {
    %c0_i32 = arith.constant 0 : i32
    %c0_i32_0 = arith.constant 0 : i32
    %c0_i32_1 = arith.constant 0 : i32
    return %c0_i32, %c0_i32_0 : i32, i32
  }
  func.func @transform_16(%arg0: i32) -> (i32, i32, i32) {
    %c0_i32 = arith.constant 0 : i32
    %c0_i32_0 = arith.constant 0 : i32
    %c0_i32_1 = arith.constant 0 : i32
    return %arg0, %c0_i32, %c0_i32_0 : i32, i32, i32
  }
}

</mosaic_0001>

<llo_original>
// kernel: tpu_custom_call.1
$region0: #{tpu_custom_call.1}
  #allocation0 [shape = 'u32[]', space=smem, size = 0x4, offset = 0x4, fixed_abs, tag = 'smem constant byte address 0x4 - core index']
  #allocation1 [shape = 'u32[144,128]{1,0:T(1,128)}', space=vmem, size = 0x12000, scoped, tag = 'internal scratch']
  %s0 = inlined_call_operand.vmem [shape: f32[2,8,442], index: 0, kind: input, shape index: {}]
  %s1 = inlined_call_operand.vmem [shape: f32[2,16,1], index: 1, kind: input, shape index: {}]
  %s2 = inlined_call_operand.vmem [shape: f32[2,16,1], index: 2, kind: input, shape index: {}]
  %s3 = inlined_call_operand.vmem [shape: f32[1,400], index: 3, kind: input, shape index: {}]
  %s4 = inlined_call_operand.vmem [shape: f32[1,320], index: 4, kind: input, shape index: {}]
  %s5 = inlined_call_operand.vmem [shape: f32[16,16], index: 5, kind: input, shape index: {}]
  %s6 = inlined_call_operand.vmem [shape: bf16[16,72], index: 6, kind: input, shape index: {}]
  %s7 = inlined_call_operand.vmem [shape: f32[16,1], index: 7, kind: input, shape index: {}]
  %s8 = inlined_call_operand.vmem [shape: f32[16,1], index: 8, kind: input, shape index: {}]
  %s9 = inlined_call_operand.vmem [shape: f32[16,1], index: 9, kind: input, shape index: {}]
  %s10 = inlined_call_operand.vmem [shape: bf16[16,144], index: 10, kind: input, shape index: {}]
  %s11 = inlined_call_operand.vmem [shape: f32[16,1], index: 11, kind: input, shape index: {}]
  %s12 = inlined_call_operand.vmem [shape: f32[16,1], index: 12, kind: input, shape index: {}]
  %s13 = inlined_call_operand.vmem [shape: f32[16,1], index: 13, kind: input, shape index: {}]
  %s14 = inlined_call_operand.vmem [shape: bf16[16,8], index: 14, kind: input, shape index: {}]
  %s15 = inlined_call_operand.vmem [shape: f32[16,1], index: 15, kind: input, shape index: {}]
  %s16 = inlined_call_operand.hbm [shape: f32[2,16,320], index: 16, kind: output, shape index: {}]
  %s17 = sld [smem:[#allocation0]]
  $region97: #{tpu_custom_call.1} parent=0
    _
  %s19 = ssub.s32 1, %s17
  %s20 = scalar_select 0, %s19, %s17
  $region1: #{tpu_custom_call.1} parent=0
    #allocation2 [shape = 'u8[49152]{0}', space=vmem, size = 0xc000, scoped, tag = 'output window, operand 0']
    #allocation3 [shape = 's32[2]{0}', space=sflag, size = 0x8, scoped, tag = 'scoped memory for tpu_custom_call.1']
    %21 = vsyncpa [#allocation3], 0
    %s22 = scalar_lea.sflag [#allocation3], 1
    %23 = vsyncpa %s22, 0
    loop: start=0, step=1, limit=4
    $region2: #{tpu_custom_call.1} parent=1 // loop_pre_header
      _
    $region3: #{tpu_custom_call.1} parent=1 // loop_header
      %s25 = sphi 0, %s29
      %p26 = scmp.ge.s32.totalorder %s25, 4
      %s35 = sphi 0, %s37
      %s38 = sphi 0, %s35
      %s39 = sphi 0, %s38
      %s55 = sphi 0, %s39
      %s61 = sphi 0, %s63
      %s64 = sphi 0, %s61
      %s65 = sphi 0, %s64
      %s81 = sphi 0, %s65
      %s87 = sphi 0, %s89
      %s90 = sphi 0, %s87
      %s91 = sphi 0, %s90
      %s107 = sphi 0, %s91
      %s111 = sphi 0, %s111
      %s113 = sphi 0, %s111
      %s114 = sphi 0, %s113
      %s128 = sphi 0, %s114
      %s132 = sphi 0, %s132
      %s134 = sphi 0, %s132
      %s135 = sphi 0, %s134
      %s149 = sphi 0, %s135
      %s153 = sphi 0, %s153
      %s155 = sphi 0, %s153
      %s156 = sphi 0, %s155
      %s170 = sphi 0, %s156
      %s174 = sphi 0, %s174
      %s176 = sphi 0, %s174
      %s177 = sphi 0, %s176
      %s191 = sphi 0, %s177
      %s195 = sphi 0, %s195
      %s197 = sphi 0, %s195
      %s198 = sphi 0, %s197
      %s212 = sphi 0, %s198
      %s216 = sphi 0, %s216
      %s218 = sphi 0, %s216
      %s219 = sphi 0, %s218
      %s233 = sphi 0, %s219
      %s237 = sphi 0, %s237
      %s239 = sphi 0, %s237
      %s240 = sphi 0, %s239
      %s254 = sphi 0, %s240
      %s258 = sphi 0, %s258
      %s260 = sphi 0, %s258
      %s261 = sphi 0, %s260
      %s275 = sphi 0, %s261
      %s279 = sphi 0, %s279
      %s281 = sphi 0, %s279
      %s282 = sphi 0, %s281
      %s296 = sphi 0, %s282
      %s300 = sphi 0, %s300
      %s302 = sphi 0, %s300
      %s303 = sphi 0, %s302
      %s317 = sphi 0, %s303
      %s321 = sphi 0, %s321
      %s323 = sphi 0, %s321
      %s324 = sphi 0, %s323
      %s338 = sphi 0, %s324
      %s342 = sphi 0, %s342
      %s344 = sphi 0, %s342
      %s345 = sphi 0, %s344
      %s359 = sphi 0, %s345
      %s363 = sphi 0, %s363
      %s365 = sphi 0, %s363
      %s366 = sphi 0, %s365
      %s380 = sphi 0, %s366
      %s386 = sphi 0, %s388
      %s389 = sphi 0, %s386
      %s390 = sphi 0, %s389
      %s406 = sphi 0, %s390
    $region4: #{tpu_custom_call.1} parent=1 // loop_header_branch
      %28 = sbr.rel (%p26) target = $region8
    $region5: #{tpu_custom_call.1} parent=1 // loop_body
      %s30 = ssub.s32 %s25, 1
      %s31 = ssub.s32 %s25, 2
      %s32 = sadd.s32 %s25, 1
      %s33 = ssub.s32 %s25, %s32
      %p34 = scmp.eq.s32.totalorder %s33, 0
      %s36 = sadd.s32 %s35, 1
      %s37 = scalar_select %p34, %s35, %s36
      %p40 = pneg %p34
      %p41 = scmp.eq.s32.totalorder %s25, 1
      %p42 = por %p40, %p41
      %p43 = scmp.ne.s32.totalorder %s35, %s38
      %p44 = scmp.eq.s32.totalorder %s25, 0
      %p45 = por %p43, %p44
      %p46 = scmp.ne.s32.totalorder %s35, %s38
      %p47 = scmp.eq.s32.totalorder %s30, 1
      %p48 = por %p46, %p47
      %p49 = scmp.ne.s32.totalorder %s38, %s39
      %p50 = scmp.eq.s32.totalorder %s30, 0
      %p51 = por %p49, %p50
      %p52 = scmp.ne.s32.totalorder %s38, %s39
      %p53 = scmp.eq.s32.totalorder %s31, 1
      %p54 = por %p52, %p53
      %p56 = scmp.ne.s32.totalorder %s39, %s55
      %p57 = scmp.eq.s32.totalorder %s31, 0
      %p58 = por %p56, %p57
      %s59 = ssub.s32 %s25, %s32
      %p60 = scmp.eq.s32.totalorder %s59, 0
      %s62 = sadd.s32 %s61, 1
      %s63 = scalar_select %p60, %s61, %s62
      %p66 = pneg %p60
      %p67 = scmp.eq.s32.totalorder %s25, 1
      %p68 = por %p66, %p67
      %p69 = scmp.ne.s32.totalorder %s61, %s64
      %p70 = scmp.eq.s32.totalorder %s25, 0
      %p71 = por %p69, %p70
      %p72 = scmp.ne.s32.totalorder %s61, %s64
      %p73 = scmp.eq.s32.totalorder %s30, 1
      %p74 = por %p72, %p73
      %p75 = scmp.ne.s32.totalorder %s64, %s65
      %p76 = scmp.eq.s32.totalorder %s30, 0
      %p77 = por %p75, %p76
      %p78 = scmp.ne.s32.totalorder %s64, %s65
      %p79 = scmp.eq.s32.totalorder %s31, 1
      %p80 = por %p78, %p79
      %p82 = scmp.ne.s32.totalorder %s65, %s81
      %p83 = scmp.eq.s32.totalorder %s31, 0
      %p84 = por %p82, %p83
      %s85 = ssub.s32 %s25, %s32
      %p86 = scmp.eq.s32.totalorder %s85, 0
      %s88 = sadd.s32 %s87, 1
      %s89 = scalar_select %p86, %s87, %s88
      %p92 = pneg %p86
      %p93 = scmp.eq.s32.totalorder %s25, 1
      %p94 = por %p92, %p93
      %p95 = scmp.ne.s32.totalorder %s87, %s90
      %p96 = scmp.eq.s32.totalorder %s25, 0
      %p97 = por %p95, %p96
      %p98 = scmp.ne.s32.totalorder %s87, %s90
      %p99 = scmp.eq.s32.totalorder %s30, 1
      %p100 = por %p98, %p99
      %p101 = scmp.ne.s32.totalorder %s90, %s91
      %p102 = scmp.eq.s32.totalorder %s30, 0
      %p103 = por %p101, %p102
      %p104 = scmp.ne.s32.totalorder %s90, %s91
      %p105 = scmp.eq.s32.totalorder %s31, 1
      %p106 = por %p104, %p105
      %p108 = scmp.ne.s32.totalorder %s91, %s107
      %p109 = scmp.eq.s32.totalorder %s31, 0
      %p110 = por %p108, %p109
      %s112 = sadd.s32 %s111, 1
      %p115 = scmp.eq.s32.totalorder %s25, 1
      %p116 = scmp.ne.s32.totalorder %s111, %s113
      %p117 = scmp.eq.s32.totalorder %s25, 0
      %p118 = por %p116, %p117
      %p119 = scmp.ne.s32.totalorder %s111, %s113
      %p120 = scmp.eq.s32.totalorder %s30, 1
      %p121 = por %p119, %p120
      %p122 = scmp.ne.s32.totalorder %s113, %s114
      %p123 = scmp.eq.s32.totalorder %s30, 0
      %p124 = por %p122, %p123
      %p125 = scmp.ne.s32.totalorder %s113, %s114
      %p126 = scmp.eq.s32.totalorder %s31, 1
      %p127 = por %p125, %p126
      %p129 = scmp.ne.s32.totalorder %s114, %s128
      %p130 = scmp.eq.s32.totalorder %s31, 0
      %p131 = por %p129, %p130
      %s133 = sadd.s32 %s132, 1
      %p136 = scmp.eq.s32.totalorder %s25, 1
      %p137 = scmp.ne.s32.totalorder %s132, %s134
      %p138 = scmp.eq.s32.totalorder %s25, 0
      %p139 = por %p137, %p138
      %p140 = scmp.ne.s32.totalorder %s132, %s134
      %p141 = scmp.eq.s32.totalorder %s30, 1
      %p142 = por %p140, %p141
      %p143 = scmp.ne.s32.totalorder %s134, %s135
      %p144 = scmp.eq.s32.totalorder %s30, 0
      %p145 = por %p143, %p144
      %p146 = scmp.ne.s32.totalorder %s134, %s135
      %p147 = scmp.eq.s32.totalorder %s31, 1
      %p148 = por %p146, %p147
      %p150 = scmp.ne.s32.totalorder %s135, %s149
      %p151 = scmp.eq.s32.totalorder %s31, 0
      %p152 = por %p150, %p151
      %s154 = sadd.s32 %s153, 1
      %p157 = scmp.eq.s32.totalorder %s25, 1
      %p158 = scmp.ne.s32.totalorder %s153, %s155
      %p159 = scmp.eq.s32.totalorder %s25, 0
      %p160 = por %p158, %p159
      %p161 = scmp.ne.s32.totalorder %s153, %s155
      %p162 = scmp.eq.s32.totalorder %s30, 1
      %p163 = por %p161, %p162
      %p164 = scmp.ne.s32.totalorder %s155, %s156
      %p165 = scmp.eq.s32.totalorder %s30, 0
      %p166 = por %p164, %p165
      %p167 = scmp.ne.s32.totalorder %s155, %s156
      %p168 = scmp.eq.s32.totalorder %s31, 1
      %p169 = por %p167, %p168
      %p171 = scmp.ne.s32.totalorder %s156, %s170
      %p172 = scmp.eq.s32.totalorder %s31, 0
      %p173 = por %p171, %p172
      %s175 = sadd.s32 %s174, 1
      %p178 = scmp.eq.s32.totalorder %s25, 1
      %p179 = scmp.ne.s32.totalorder %s174, %s176
      %p180 = scmp.eq.s32.totalorder %s25, 0
      %p181 = por %p179, %p180
      %p182 = scmp.ne.s32.totalorder %s174, %s176
      %p183 = scmp.eq.s32.totalorder %s30, 1
      %p184 = por %p182, %p183
      %p185 = scmp.ne.s32.totalorder %s176, %s177
      %p186 = scmp.eq.s32.totalorder %s30, 0
      %p187 = por %p185, %p186
      %p188 = scmp.ne.s32.totalorder %s176, %s177
      %p189 = scmp.eq.s32.totalorder %s31, 1
      %p190 = por %p188, %p189
      %p192 = scmp.ne.s32.totalorder %s177, %s191
      %p193 = scmp.eq.s32.totalorder %s31, 0
      %p194 = por %p192, %p193
      %s196 = sadd.s32 %s195, 1
      %p199 = scmp.eq.s32.totalorder %s25, 1
      %p200 = scmp.ne.s32.totalorder %s195, %s197
      %p201 = scmp.eq.s32.totalorder %s25, 0
      %p202 = por %p200, %p201
      %p203 = scmp.ne.s32.totalorder %s195, %s197
      %p204 = scmp.eq.s32.totalorder %s30, 1
      %p205 = por %p203, %p204
      %p206 = scmp.ne.s32.totalorder %s197, %s198
      %p207 = scmp.eq.s32.totalorder %s30, 0
      %p208 = por %p206, %p207
      %p209 = scmp.ne.s32.totalorder %s197, %s198
      %p210 = scmp.eq.s32.totalorder %s31, 1
      %p211 = por %p209, %p210
      %p213 = scmp.ne.s32.totalorder %s198, %s212
      %p214 = scmp.eq.s32.totalorder %s31, 0
      %p215 = por %p213, %p214
      %s217 = sadd.s32 %s216, 1
      %p220 = scmp.eq.s32.totalorder %s25, 1
      %p221 = scmp.ne.s32.totalorder %s216, %s218
      %p222 = scmp.eq.s32.totalorder %s25, 0
      %p223 = por %p221, %p222
      %p224 = scmp.ne.s32.totalorder %s216, %s218
      %p225 = scmp.eq.s32.totalorder %s30, 1
      %p226 = por %p224, %p225
      %p227 = scmp.ne.s32.totalorder %s218, %s219
      %p228 = scmp.eq.s32.totalorder %s30, 0
      %p229 = por %p227, %p228
      %p230 = scmp.ne.s32.totalorder %s218, %s219
      %p231 = scmp.eq.s32.totalorder %s31, 1
      %p232 = por %p230, %p231
      %p234 = scmp.ne.s32.totalorder %s219, %s233
      %p235 = scmp.eq.s32.totalorder %s31, 0
      %p236 = por %p234, %p235
      %s238 = sadd.s32 %s237, 1
      %p241 = scmp.eq.s32.totalorder %s25, 1
      %p242 = scmp.ne.s32.totalorder %s237, %s239
      %p243 = scmp.eq.s32.totalorder %s25, 0
      %p244 = por %p242, %p243
      %p245 = scmp.ne.s32.totalorder %s237, %s239
      %p246 = scmp.eq.s32.totalorder %s30, 1
      %p247 = por %p245, %p246
      %p248 = scmp.ne.s32.totalorder %s239, %s240
      %p249 = scmp.eq.s32.totalorder %s30, 0
      %p250 = por %p248, %p249
      %p251 = scmp.ne.s32.totalorder %s239, %s240
      %p252 = scmp.eq.s32.totalorder %s31, 1
      %p253 = por %p251, %p252
      %p255 = scmp.ne.s32.totalorder %s240, %s254
      %p256 = scmp.eq.s32.totalorder %s31, 0
      %p257 = por %p255, %p256
      %s259 = sadd.s32 %s258, 1
      %p262 = scmp.eq.s32.totalorder %s25, 1
      %p263 = scmp.ne.s32.totalorder %s258, %s260
      %p264 = scmp.eq.s32.totalorder %s25, 0
      %p265 = por %p263, %p264
      %p266 = scmp.ne.s32.totalorder %s258, %s260
      %p267 = scmp.eq.s32.totalorder %s30, 1
      %p268 = por %p266, %p267
      %p269 = scmp.ne.s32.totalorder %s260, %s261
      %p270 = scmp.eq.s32.totalorder %s30, 0
      %p271 = por %p269, %p270
      %p272 = scmp.ne.s32.totalorder %s260, %s261
      %p273 = scmp.eq.s32.totalorder %s31, 1
      %p274 = por %p272, %p273
      %p276 = scmp.ne.s32.totalorder %s261, %s275
      %p277 = scmp.eq.s32.totalorder %s31, 0
      %p278 = por %p276, %p277
      %s280 = sadd.s32 %s279, 1
      %p283 = scmp.eq.s32.totalorder %s25, 1
      %p284 = scmp.ne.s32.totalorder %s279, %s281
      %p285 = scmp.eq.s32.totalorder %s25, 0
      %p286 = por %p284, %p285
      %p287 = scmp.ne.s32.totalorder %s279, %s281
      %p288 = scmp.eq.s32.totalorder %s30, 1
      %p289 = por %p287, %p288
      %p290 = scmp.ne.s32.totalorder %s281, %s282
      %p291 = scmp.eq.s32.totalorder %s30, 0
      %p292 = por %p290, %p291
      %p293 = scmp.ne.s32.totalorder %s281, %s282
      %p294 = scmp.eq.s32.totalorder %s31, 1
      %p295 = por %p293, %p294
      %p297 = scmp.ne.s32.totalorder %s282, %s296
      %p298 = scmp.eq.s32.totalorder %s31, 0
      %p299 = por %p297, %p298
      %s301 = sadd.s32 %s300, 1
      %p304 = scmp.eq.s32.totalorder %s25, 1
      %p305 = scmp.ne.s32.totalorder %s300, %s302
      %p306 = scmp.eq.s32.totalorder %s25, 0
      %p307 = por %p305, %p306
      %p308 = scmp.ne.s32.totalorder %s300, %s302
      %p309 = scmp.eq.s32.totalorder %s30, 1
      %p310 = por %p308, %p309
      %p311 = scmp.ne.s32.totalorder %s302, %s303
      %p312 = scmp.eq.s32.totalorder %s30, 0
      %p313 = por %p311, %p312
      %p314 = scmp.ne.s32.totalorder %s302, %s303
      %p315 = scmp.eq.s32.totalorder %s31, 1
      %p316 = por %p314, %p315
      %p318 = scmp.ne.s32.totalorder %s303, %s317
      %p319 = scmp.eq.s32.totalorder %s31, 0
      %p320 = por %p318, %p319
      %s322 = sadd.s32 %s321, 1
      %p325 = scmp.eq.s32.totalorder %s25, 1
      %p326 = scmp.ne.s32.totalorder %s321, %s323
      %p327 = scmp.eq.s32.totalorder %s25, 0
      %p328 = por %p326, %p327
      %p329 = scmp.ne.s32.totalorder %s321, %s323
      %p330 = scmp.eq.s32.totalorder %s30, 1
      %p331 = por %p329, %p330
      %p332 = scmp.ne.s32.totalorder %s323, %s324
      %p333 = scmp.eq.s32.totalorder %s30, 0
      %p334 = por %p332, %p333
      %p335 = scmp.ne.s32.totalorder %s323, %s324
      %p336 = scmp.eq.s32.totalorder %s31, 1
      %p337 = por %p335, %p336
      %p339 = scmp.ne.s32.totalorder %s324, %s338
      %p340 = scmp.eq.s32.totalorder %s31, 0
      %p341 = por %p339, %p340
      %s343 = sadd.s32 %s342, 1
      %p346 = scmp.eq.s32.totalorder %s25, 1
      %p347 = scmp.ne.s32.totalorder %s342, %s344
      %p348 = scmp.eq.s32.totalorder %s25, 0
      %p349 = por %p347, %p348
      %p350 = scmp.ne.s32.totalorder %s342, %s344
      %p351 = scmp.eq.s32.totalorder %s30, 1
      %p352 = por %p350, %p351
      %p353 = scmp.ne.s32.totalorder %s344, %s345
      %p354 = scmp.eq.s32.totalorder %s30, 0
      %p355 = por %p353, %p354
      %p356 = scmp.ne.s32.totalorder %s344, %s345
      %p357 = scmp.eq.s32.totalorder %s31, 1
      %p358 = por %p356, %p357
      %p360 = scmp.ne.s32.totalorder %s345, %s359
      %p361 = scmp.eq.s32.totalorder %s31, 0
      %p362 = por %p360, %p361
      %s364 = sadd.s32 %s363, 1
      %p367 = scmp.eq.s32.totalorder %s25, 1
      %p368 = scmp.ne.s32.totalorder %s363, %s365
      %p369 = scmp.eq.s32.totalorder %s25, 0
      %p370 = por %p368, %p369
      %p371 = scmp.ne.s32.totalorder %s363, %s365
      %p372 = scmp.eq.s32.totalorder %s30, 1
      %p373 = por %p371, %p372
      %p374 = scmp.ne.s32.totalorder %s365, %s366
      %p375 = scmp.eq.s32.totalorder %s30, 0
      %p376 = por %p374, %p375
      %p377 = scmp.ne.s32.totalorder %s365, %s366
      %p378 = scmp.eq.s32.totalorder %s31, 1
      %p379 = por %p377, %p378
      %p381 = scmp.ne.s32.totalorder %s366, %s380
      %p382 = scmp.eq.s32.totalorder %s31, 0
      %p383 = por %p381, %p382
      %s384 = ssub.s32 %s25, %s32
      %p385 = scmp.eq.s32.totalorder %s384, 0
      %s387 = sadd.s32 %s386, 1
      %s388 = scalar_select %p385, %s386, %s387
      %p391 = pneg %p385
      %p392 = scmp.eq.s32.totalorder %s25, 1
      %p393 = por %p391, %p392
      %p394 = scmp.ne.s32.totalorder %s386, %s389
      %p395 = scmp.eq.s32.totalorder %s25, 0
      %p396 = por %p394, %p395
      %p397 = scmp.ne.s32.totalorder %s386, %s389
      %p398 = scmp.eq.s32.totalorder %s30, 1
      %p399 = por %p397, %p398
      %p400 = scmp.ne.s32.totalorder %s389, %s390
      %p401 = scmp.eq.s32.totalorder %s30, 0
      %p402 = por %p400, %p401
      %p403 = scmp.ne.s32.totalorder %s389, %s390
      %p404 = scmp.eq.s32.totalorder %s31, 1
      %p405 = por %p403, %p404
      %p407 = scmp.ne.s32.totalorder %s390, %s406
      %p408 = scmp.eq.s32.totalorder %s31, 0
      %p409 = por %p407, %p408
      %p410 = scmp.le.s32.totalorder 1, %s25
      %p411 = scmp.lt.s32.totalorder %s25, 3
      %p412 = pnand %p410, %p411
      %p413 = pneg %p412
      // Predicated region
      $region9: #{tpu_custom_call.1} parent=5 // pred_check
        _
      $region10: #{tpu_custom_call.1} parent=5 // pred_check_branch
        %415 = sbr.rel (%p412) target = $region12
      $region11: #{tpu_custom_call.1} parent=5 // pred_region
        %s416 = ssub.s32 %s25, 1
        // Predicated region
        $region13: #{tpu_custom_call.1} parent=11 // pred_check
          %p417 = pneg %p124
        $region14: #{tpu_custom_call.1} parent=11 // pred_check_branch
          %419 = sbr.rel (%p417) target = $region16
        $region15: #{tpu_custom_call.1} parent=11 // pred_region
          _
        $region16: #{tpu_custom_call.1} parent=11 // pred_fallthru
          _
        // Predicated region
        $region17: #{tpu_custom_call.1} parent=11 // pred_check
          %p420 = pneg %p145
        $region18: #{tpu_custom_call.1} parent=11 // pred_check_branch
          %422 = sbr.rel (%p420) target = $region20
        $region19: #{tpu_custom_call.1} parent=11 // pred_region
          _
        $region20: #{tpu_custom_call.1} parent=11 // pred_fallthru
          _
        // Predicated region
        $region21: #{tpu_custom_call.1} parent=11 // pred_check
          %p423 = pneg %p166
        $region22: #{tpu_custom_call.1} parent=11 // pred_check_branch
          %425 = sbr.rel (%p423) target = $region24
        $region23: #{tpu_custom_call.1} parent=11 // pred_region
          _
        $region24: #{tpu_custom_call.1} parent=11 // pred_fallthru
          _
        // Predicated region
        $region25: #{tpu_custom_call.1} parent=11 // pred_check
          %p426 = pneg %p187
        $region26: #{tpu_custom_call.1} parent=11 // pred_check_branch
          %428 = sbr.rel (%p426) target = $region28
        $region27: #{tpu_custom_call.1} parent=11 // pred_region
          _
        $region28: #{tpu_custom_call.1} parent=11 // pred_fallthru
          _
        // Predicated region
        $region29: #{tpu_custom_call.1} parent=11 // pred_check
          %p429 = pneg %p208
        $region30: #{tpu_custom_call.1} parent=11 // pred_check_branch
          %431 = sbr.rel (%p429) target = $region32
        $region31: #{tpu_custom_call.1} parent=11 // pred_region
          _
        $region32: #{tpu_custom_call.1} parent=11 // pred_fallthru
          _
        // Predicated region
        $region33: #{tpu_custom_call.1} parent=11 // pred_check
          %p432 = pneg %p229
        $region34: #{tpu_custom_call.1} parent=11 // pred_check_branch
          %434 = sbr.rel (%p432) target = $region36
        $region35: #{tpu_custom_call.1} parent=11 // pred_region
          _
        $region36: #{tpu_custom_call.1} parent=11 // pred_fallthru
          _
        // Predicated region
        $region37: #{tpu_custom_call.1} parent=11 // pred_check
          %p435 = pneg %p250
        $region38: #{tpu_custom_call.1} parent=11 // pred_check_branch
          %437 = sbr.rel (%p435) target = $region40
        $region39: #{tpu_custom_call.1} parent=11 // pred_region
          _
        $region40: #{tpu_custom_call.1} parent=11 // pred_fallthru
          _
        // Predicated region
        $region41: #{tpu_custom_call.1} parent=11 // pred_check
          %p438 = pneg %p271
        $region42: #{tpu_custom_call.1} parent=11 // pred_check_branch
          %440 = sbr.rel (%p438) target = $region44
        $region43: #{tpu_custom_call.1} parent=11 // pred_region
          _
        $region44: #{tpu_custom_call.1} parent=11 // pred_fallthru
          _
        // Predicated region
        $region45: #{tpu_custom_call.1} parent=11 // pred_check
          %p441 = pneg %p292
        $region46: #{tpu_custom_call.1} parent=11 // pred_check_branch
          %443 = sbr.rel (%p441) target = $region48
        $region47: #{tpu_custom_call.1} parent=11 // pred_region
          _
        $region48: #{tpu_custom_call.1} parent=11 // pred_fallthru
          _
        // Predicated region
        $region49: #{tpu_custom_call.1} parent=11 // pred_check
          %p444 = pneg %p313
        $region50: #{tpu_custom_call.1} parent=11 // pred_check_branch
          %446 = sbr.rel (%p444) target = $region52
        $region51: #{tpu_custom_call.1} parent=11 // pred_region
          _
        $region52: #{tpu_custom_call.1} parent=11 // pred_fallthru
          _
        // Predicated region
        $region53: #{tpu_custom_call.1} parent=11 // pred_check
          %p447 = pneg %p334
        $region54: #{tpu_custom_call.1} parent=11 // pred_check_branch
          %449 = sbr.rel (%p447) target = $region56
        $region55: #{tpu_custom_call.1} parent=11 // pred_region
          _
        $region56: #{tpu_custom_call.1} parent=11 // pred_fallthru
          _
        // Predicated region
        $region57: #{tpu_custom_call.1} parent=11 // pred_check
          %p450 = pneg %p355
        $region58: #{tpu_custom_call.1} parent=11 // pred_check_branch
          %452 = sbr.rel (%p450) target = $region60
        $region59: #{tpu_custom_call.1} parent=11 // pred_region
          _
        $region60: #{tpu_custom_call.1} parent=11 // pred_fallthru
          _
        // Predicated region
        $region61: #{tpu_custom_call.1} parent=11 // pred_check
          %p453 = pneg %p376
        $region62: #{tpu_custom_call.1} parent=11 // pred_check_branch
          %455 = sbr.rel (%p453) target = $region64
        $region63: #{tpu_custom_call.1} parent=11 // pred_region
          _
        $region64: #{tpu_custom_call.1} parent=11 // pred_fallthru
          _
      $region12: #{tpu_custom_call.1} parent=5 // pred_fallthru
        _
      %p456 = scmp.lt.s32.totalorder %s25, 2
      // Predicated region
      $region65: #{tpu_custom_call.1} parent=5 // pred_check
        %p457 = pneg %p456
      $region66: #{tpu_custom_call.1} parent=5 // pred_check_branch
        %459 = sbr.rel (%p457) target = $region68
      $region67: #{tpu_custom_call.1} parent=5 // pred_region
        // Predicated region
        $region69: #{tpu_custom_call.1} parent=67 // pred_check
          %p460 = pneg %p45
        $region70: #{tpu_custom_call.1} parent=67 // pred_check_branch
          %462 = sbr.rel (%p460) target = $region72
        $region71: #{tpu_custom_call.1} parent=67 // pred_region
          %p463 = scmp.lt.s32.totalorder %s25, 1
          %s464 = scalar_select %p463, %s25, 1
          %s465 = smul.addr %s464, 4
          %s466 = smul.addr %s465, 8
          %s467 = scalar_lea.vmem %s0, %s466
        $region72: #{tpu_custom_call.1} parent=67 // pred_fallthru
          _
        // Predicated region
        $region73: #{tpu_custom_call.1} parent=67 // pred_check
          %p468 = pneg %p71
        $region74: #{tpu_custom_call.1} parent=67 // pred_check_branch
          %470 = sbr.rel (%p468) target = $region76
        $region75: #{tpu_custom_call.1} parent=67 // pred_region
          %p471 = scmp.lt.s32.totalorder %s25, 1
          %s472 = scalar_select %p471, %s25, 1
          %s473 = smul.addr %s472, 2
          %s474 = smul.addr %s473, 8
          %s475 = scalar_lea.vmem %s1, %s474
        $region76: #{tpu_custom_call.1} parent=67 // pred_fallthru
          _
        // Predicated region
        $region77: #{tpu_custom_call.1} parent=67 // pred_check
          %p476 = pneg %p97
        $region78: #{tpu_custom_call.1} parent=67 // pred_check_branch
          %478 = sbr.rel (%p476) target = $region80
        $region79: #{tpu_custom_call.1} parent=67 // pred_region
          %p479 = scmp.lt.s32.totalorder %s25, 1
          %s480 = scalar_select %p479, %s25, 1
          %s481 = smul.addr %s480, 2
          %s482 = smul.addr %s481, 8
          %s483 = scalar_lea.vmem %s2, %s482
        $region80: #{tpu_custom_call.1} parent=67 // pred_fallthru
          _
      $region68: #{tpu_custom_call.1} parent=5 // pred_fallthru
        _
      %p484 = scmp.le.s32.totalorder 1, %s25
      %p485 = scmp.lt.s32.totalorder %s25, 3
      %p486 = pnand %p484, %p485
      %p487 = pneg %p486
      // Predicated region
      $region81: #{tpu_custom_call.1} parent=5 // pred_check
        _
      $region82: #{tpu_custom_call.1} parent=5 // pred_check_branch
        %489 = sbr.rel (%p486) target = $region84
      $region83: #{tpu_custom_call.1} parent=5 // pred_region
        %s490 = ssub.s32 %s25, 1
        %p491 = scmp.lt.s32.totalorder %s30, 1
        %s492 = scalar_select %p491, %s30, 1
        %s493 = smul.addr %s492, 4
        %s494 = smul.addr %s493, 8
        %s495 = scalar_lea.vmem %s0, %s494
        %p496 = pneg %p51
        %p497 = pneg %p48
        %p498 = scmp.lt.s32.totalorder %s30, 1
        %s499 = scalar_select %p498, %s30, 1
        %s500 = smul.addr %s499, 2
        %s501 = smul.addr %s500, 8
        %s502 = scalar_lea.vmem %s1, %s501
        %p503 = pneg %p77
        %p504 = pneg %p74
        %p505 = scmp.lt.s32.totalorder %s30, 1
        %s506 = scalar_select %p505, %s30, 1
        %s507 = smul.addr %s506, 2
        %s508 = smul.addr %s507, 8
        %s509 = scalar_lea.vmem %s2, %s508
        %p510 = pneg %p103
        %p511 = pneg %p100
        %p512 = pneg %p124
        %p513 = pneg %p121
        %p514 = pneg %p145
        %p515 = pneg %p142
        %p516 = pneg %p166
        %p517 = pneg %p163
        %p518 = pneg %p187
        %p519 = pneg %p184
        %p520 = pneg %p208
        %p521 = pneg %p205
        %p522 = pneg %p229
        %p523 = pneg %p226
        %p524 = pneg %p250
        %p525 = pneg %p247
        %p526 = pneg %p271
        %p527 = pneg %p268
        %p528 = pneg %p292
        %p529 = pneg %p289
        %p530 = pneg %p313
        %p531 = pneg %p310
        %p532 = pneg %p334
        %p533 = pneg %p331
        %p534 = pneg %p355
        %p535 = pneg %p352
        %p536 = pneg %p376
        %p537 = pneg %p373
        %p538 = pneg %p402
        %p539 = pneg %p399
        %s540 = sand.u32 %s389, 1
        %s541 = scalar_lea.sflag [#allocation3], %s540
        %s542 = sand.u32 %s389, 1
        %s543 = smul.addr %s542, 48
        %s544 = scalar_lea.vmem [#allocation2], %s543
        %p545 = scmp.lt.s32.totalorder %s30, 1
        %s546 = scalar_select %p545, %s30, 1
        %s547 = smul.addr %s546, 4
        %s548 = smul.addr %s547, 8
        %s549 = scalar_lea.vmem %s0, %s548
        %p550 = scmp.lt.s32.totalorder %s30, 1
        %s551 = scalar_select %p550, %s30, 1
        %s552 = smul.addr %s551, 2
        %s553 = smul.addr %s552, 8
        %s554 = scalar_lea.vmem %s1, %s553
        %p555 = scmp.lt.s32.totalorder %s30, 1
        %s556 = scalar_select %p555, %s30, 1
        %s557 = smul.addr %s556, 2
        %s558 = smul.addr %s557, 8
        %s559 = scalar_lea.vmem %s2, %s558
        %v561 = vld [vmem:[%s549] sm:$0xff]
        %v562 = vld [vmem:[%s549 + $0x8] sm:$0xff]
        %v563 = vld [vmem:[%s549 + $0x10] sm:$0xff]
        %v564 = vld [vmem:[%s549 + $0x18] sm:$0xff]
        %v565 = vld [vmem:[%s3] sm:$0xf]
        %v566 = vld [vmem:[%s4] sm:$0x7]
        %v567 = vld [vmem:[%s5] sm:$0xff]
        %v568 = vld [vmem:[%s5 + $0x8] sm:$0xff]
        %573 = vrot.lane.b32.xlu0 %v561, 127
        %v574 = vpop.permute.xlu0 %573
        %575 = vrot.lane.b32.xlu0 %v562, 127
        %v576 = vpop.permute.xlu0 %575
        %577 = vrot.lane.b32.xlu0 %v563, 127
        %v578 = vpop.permute.xlu0 %577
        %579 = vrot.lane.b32.xlu0 %v564, 127
        %v580 = vpop.permute.xlu0 %579
        %vm581 = vcmask 1039360
        %v582 = vsel %vm581, %v574, %v576
        %v583 = vsel %vm581, %v576, %v578
        %v584 = vsel %vm581, %v578, %v580
        %589 = vrot.lane.b32.xlu0 %v561, 126
        %v590 = vpop.permute.xlu0 %589
        %591 = vrot.lane.b32.xlu0 %v562, 126
        %v592 = vpop.permute.xlu0 %591
        %593 = vrot.lane.b32.xlu0 %v563, 126
        %v594 = vpop.permute.xlu0 %593
        %595 = vrot.lane.b32.xlu0 %v564, 126
        %v596 = vpop.permute.xlu0 %595
        %vm597 = vcmask 1031168
        %v598 = vsel %vm597, %v590, %v592
        %v599 = vsel %vm597, %v592, %v594
        %v600 = vsel %vm597, %v594, %v596
        %605 = vrot.lane.b32.xlu0 %v561, 108
        %v606 = vpop.permute.xlu0 %605
        %607 = vrot.lane.b32.xlu0 %v562, 108
        %v608 = vpop.permute.xlu0 %607
        %609 = vrot.lane.b32.xlu0 %v563, 108
        %v610 = vpop.permute.xlu0 %609
        %611 = vrot.lane.b32.xlu0 %v564, 108
        %v612 = vpop.permute.xlu0 %611
        %vm613 = vcmask 883712
        %v614 = vsel %vm613, %v606, %v608
        %v615 = vsel %vm613, %v608, %v610
        %v616 = vsel %vm613, %v610, %v612
        %621 = vrot.lane.b32.xlu0 %v561, 107
        %v622 = vpop.permute.xlu0 %621
        %623 = vrot.lane.b32.xlu0 %v562, 107
        %v624 = vpop.permute.xlu0 %623
        %625 = vrot.lane.b32.xlu0 %v563, 107
        %v626 = vpop.permute.xlu0 %625
        %627 = vrot.lane.b32.xlu0 %v564, 107
        %v628 = vpop.permute.xlu0 %627
        %vm629 = vcmask 875520
        %v630 = vsel %vm629, %v622, %v624
        %v631 = vsel %vm629, %v624, %v626
        %v632 = vsel %vm629, %v626, %v628
        %637 = vrot.lane.b32.xlu0 %v561, 106
        %v638 = vpop.permute.xlu0 %637
        %639 = vrot.lane.b32.xlu0 %v562, 106
        %v640 = vpop.permute.xlu0 %639
        %641 = vrot.lane.b32.xlu0 %v563, 106
        %v642 = vpop.permute.xlu0 %641
        %643 = vrot.lane.b32.xlu0 %v564, 106
        %v644 = vpop.permute.xlu0 %643
        %vm645 = vcmask 867328
        %v646 = vsel %vm645, %v638, %v640
        %v647 = vsel %vm645, %v640, %v642
        %v648 = vsel %vm645, %v642, %v644
        %653 = vrot.lane.b32.xlu0 %v561, 88
        %v654 = vpop.permute.xlu0 %653
        %655 = vrot.lane.b32.xlu0 %v562, 88
        %v656 = vpop.permute.xlu0 %655
        %657 = vrot.lane.b32.xlu0 %v563, 88
        %v658 = vpop.permute.xlu0 %657
        %659 = vrot.lane.b32.xlu0 %v564, 88
        %v660 = vpop.permute.xlu0 %659
        %vm661 = vcmask 719872
        %v662 = vsel %vm661, %v654, %v656
        %v663 = vsel %vm661, %v656, %v658
        %v664 = vsel %vm661, %v658, %v660
        %669 = vrot.lane.b32.xlu0 %v561, 87
        %v670 = vpop.permute.xlu0 %669
        %671 = vrot.lane.b32.xlu0 %v562, 87
        %v672 = vpop.permute.xlu0 %671
        %673 = vrot.lane.b32.xlu0 %v563, 87
        %v674 = vpop.permute.xlu0 %673
        %675 = vrot.lane.b32.xlu0 %v564, 87
        %v676 = vpop.permute.xlu0 %675
        %vm677 = vcmask 711680
        %v678 = vsel %vm677, %v670, %v672
        %v679 = vsel %vm677, %v672, %v674
        %v680 = vsel %vm677, %v674, %v676
        %685 = vrot.lane.b32.xlu0 %v561, 86
        %v686 = vpop.permute.xlu0 %685
        %687 = vrot.lane.b32.xlu0 %v562, 86
        %v688 = vpop.permute.xlu0 %687
        %689 = vrot.lane.b32.xlu0 %v563, 86
        %v690 = vpop.permute.xlu0 %689
        %691 = vrot.lane.b32.xlu0 %v564, 86
        %v692 = vpop.permute.xlu0 %691
        %vm693 = vcmask 703488
        %v694 = vsel %vm693, %v686, %v688
        %v695 = vsel %vm693, %v688, %v690
        %v696 = vsel %vm693, %v690, %v692
        %v701 = vld [vmem:[%s6] sm:$0xf]
        %v702 = vld [vmem:[%s6 + $0x4] sm:$0xf]
        %v703 = vpack.c.bf16 %v582, %v561
        %v704 = vpack.c.bf16 %v583, %v562
        %v705 = vpack.c.bf16 %v584, %v563
        %v706 = vpack.c.bf16 %v580, %v564
        %v707 = vpack.c.bf16 %v614, %v598
        %v708 = vpack.c.bf16 %v615, %v599
        %v709 = vpack.c.bf16 %v616, %v600
        %v710 = vpack.c.bf16 %v612, %v596
        %v711 = vpack.c.bf16 %v646, %v630
        %v712 = vpack.c.bf16 %v647, %v631
        %v713 = vpack.c.bf16 %v648, %v632
        %v714 = vpack.c.bf16 %v644, %v628
        %v715 = vpack.c.bf16 %v678, %v662
        %v716 = vpack.c.bf16 %v679, %v663
        %v717 = vpack.c.bf16 %v680, %v664
        %v718 = vpack.c.bf16 %v676, %v660
        %v719 = vpack.c.bf16 %v694, %v694
        %v720 = vpack.c.bf16 %v695, %v695
        %v721 = vpack.c.bf16 %v696, %v696
        %v722 = vpack.c.bf16 %v692, %v692
        %v723 = vld [vmem:[%s7] sm:$0xff]
        %v724 = vld [vmem:[%s7 + $0x8] sm:$0xff]
        %726 = vset.pattern.permute.xlu0 0
        %727 = vperm.xlu0 %726, %v723
        %v728 = vpop.permute.xlu0 %727
        %731 = vset.pattern.permute.xlu0 0
        %732 = vperm.xlu0 %731, %v724
        %v733 = vpop.permute.xlu0 %732
        %v737 = vunpack.c.l.b16 %v701
        %v738 = vunpack.c.l.b16 %v702
        %v739 = vpack.c.b16 %v738, %v737
        %vm740 = vcmask 588800
        %v742 = vsel %vm740, %v739, 0
        %vm744 = vcmask 1043456
        %v746 = vsel %vm744, %v719, 0
        %v749 = vsel %vm744, %v720, 0
        %v752 = vsel %vm744, %v721, 0
        %v755 = vsel %vm744, %v722, 0
        %757 = vmatprep.subr.bf16.mxu0 %v704
        %758 = vmatpush1.bf16.msra.mxu0 %v703
        %759 = vmatprep.subr.bf16.mxu0 %v708
        %760 = vmatpush1.bf16.msra.mxu0 %v707
        %761 = vmatprep.subr.bf16.mxu0 %v712
        %762 = vmatpush1.bf16.msra.mxu0 %v711
        %763 = vmatprep.subr.bf16.mxu0 %v716
        %764 = vmatpush1.bf16.msra.mxu0 %v715
        %765 = vmatprep.subr.bf16.mxu0 %v749
        %766 = vmatpush1.bf16.msra.mxu0 %v746
        %767 = vmatprep.subr.bf16.mxu0 0
        %768 = vmatpush1.bf16.msra.mxu0 0
        %769 = vmatprep.subr.bf16.mxu0 0
        %770 = vmatpush1.bf16.msra.mxu0 0
        %771 = vmatprep.subr.bf16.mxu0 0
        %772 = vmatpush1.bf16.msra.mxu0 0
        %773 = vmatprep.subr.bf16.mxu0 0
        %774 = vmatpush1.bf16.msra.mxu0 0
        %775 = vmatprep.subr.bf16.mxu0 0
        %776 = vmatpush1.bf16.msra.mxu0 0
        %777 = vmatprep.subr.bf16.mxu0 0
        %778 = vmatpush1.bf16.msra.mxu0 0
        %779 = vmatprep.subr.bf16.mxu0 0
        %780 = vmatpush1.bf16.msra.mxu0 0
        %781 = vmatprep.subr.bf16.mxu0 0
        %782 = vmatpush1.bf16.msra.mxu0 0
        %783 = vmatprep.subr.bf16.mxu0 0
        %784 = vmatpush1.bf16.msra.mxu0 0
        %785 = vmatprep.subr.bf16.mxu0 0
        %786 = vmatpush1.bf16.msra.mxu0 0
        %787 = vmatprep.subr.bf16.mxu0 0
        %788 = vmatpush1.bf16.msra.mxu0 0
        %789 = vmatprep.mubr.bf16.mxu0 0
        %790 = vmatmul.mubr.bf16.gmra.mrb[0].mxu0 %v742
        %v791 = vpop.f32.mrb[0].mxu0
        %v792 = vadd.f32 %v728, %v791
        %v793 = vpop.f32.mrb[0].mxu0
        %v794 = vadd.f32 %v728, %v793
        %v795 = vpop.f32.mrb[0].mxu0
        %v796 = vadd.f32 %v733, %v795
        %v797 = vpop.f32.mrb[0].mxu0
        %v798 = vadd.f32 %v733, %v797
        %799 = vdwg.mxu0
        %800 = vmatprep.subr.bf16.mxu0 %v706
        %801 = vmatpush1.bf16.msra.mxu0 %v705
        %802 = vmatprep.subr.bf16.mxu0 %v710
        %803 = vmatpush1.bf16.msra.mxu0 %v709
        %804 = vmatprep.subr.bf16.mxu0 %v714
        %805 = vmatpush1.bf16.msra.mxu0 %v713
        %806 = vmatprep.subr.bf16.mxu0 %v718
        %807 = vmatpush1.bf16.msra.mxu0 %v717
        %808 = vmatprep.subr.bf16.mxu0 %v755
        %809 = vmatpush1.bf16.msra.mxu0 %v752
        %810 = vmatprep.subr.bf16.mxu0 0
        %811 = vmatpush1.bf16.msra.mxu0 0
        %812 = vmatprep.subr.bf16.mxu0 0
        %813 = vmatpush1.bf16.msra.mxu0 0
        %814 = vmatprep.subr.bf16.mxu0 0
        %815 = vmatpush1.bf16.msra.mxu0 0
        %816 = vmatprep.subr.bf16.mxu0 0
        %817 = vmatpush1.bf16.msra.mxu0 0
        %818 = vmatprep.subr.bf16.mxu0 0
        %819 = vmatpush1.bf16.msra.mxu0 0
        %820 = vmatprep.subr.bf16.mxu0 0
        %821 = vmatpush1.bf16.msra.mxu0 0
        %822 = vmatprep.subr.bf16.mxu0 0
        %823 = vmatpush1.bf16.msra.mxu0 0
        %824 = vmatprep.subr.bf16.mxu0 0
        %825 = vmatpush1.bf16.msra.mxu0 0
        %826 = vmatprep.subr.bf16.mxu0 0
        %827 = vmatpush1.bf16.msra.mxu0 0
        %828 = vmatprep.subr.bf16.mxu0 0
        %829 = vmatpush1.bf16.msra.mxu0 0
        %830 = vmatprep.subr.bf16.mxu0 0
        %831 = vmatpush1.bf16.msra.mxu0 0
        %832 = vmatprep.mubr.bf16.mxu0 0
        %833 = vmatmul.mubr.bf16.gmra.mrb[0].mxu0 %v742
        %v834 = vpop.f32.mrb[0].mxu0
        %v835 = vadd.f32 %v728, %v834
        %v836 = vpop.f32.mrb[0].mxu0
        %v837 = vadd.f32 %v728, %v836
        %v838 = vpop.f32.mrb[0].mxu0
        %v839 = vadd.f32 %v733, %v838
        %v840 = vpop.f32.mrb[0].mxu0
        %v841 = vadd.f32 %v733, %v840
        %842 = vdwg.mxu0
        %v843 = vld [vmem:[%s8] sm:$0xff]
        %v844 = vld [vmem:[%s8 + $0x8] sm:$0xff]
        %v845 = vld [vmem:[%s9] sm:$0xff]
        %v846 = vld [vmem:[%s9 + $0x8] sm:$0xff]
        %v848 = vlaneseq
        %v849 = vshrl.u32 %v848, 7
        %v850 = vsub.s32 0, %v849
        %v851 = vrot.slane %v565, %v850
        %v852 = vlaneseq
        %v853 = vshrl.u32 %v852, 7
        %v854 = vsub.s32 1, %v853
        %v855 = vrot.slane %v565, %v854
        %v856 = vlaneseq
        %v857 = vshrl.u32 %v856, 7
        %v858 = vsub.s32 2, %v857
        %v859 = vrot.slane %v565, %v858
        %v860 = vlaneseq
        %v861 = vshrl.u32 %v860, 7
        %v862 = vsub.s32 3, %v861
        %v863 = vrot.slane %v565, %v862
        %v868 = vmul.f32 %v792, %v851
        %v869 = vmul.f32 %v794, %v855
        %v870 = vmul.f32 %v835, %v859
        %v871 = vmul.f32 %v837, %v863
        %v872 = vmul.f32 %v796, %v851
        %v873 = vmul.f32 %v798, %v855
        %v874 = vmul.f32 %v839, %v859
        %v875 = vmul.f32 %v841, %v863
        %v876 = vadd.f32 %v868, %v869
        %v877 = vadd.f32 %v876, %v870
        %vm878 = vcmask 130048
        %v879 = vsel %vm878, %v871, 0.0
        %v880 = vadd.f32 %v877, %v879
        %881 = vadd.xlane.f32.xlu0 %v880
        %v882 = vpop.xlane.xlu0 %881
        %v883 = vadd.f32 %v872, %v873
        %v884 = vadd.f32 %v883, %v874
        %v885 = vsel %vm878, %v875, 0.0
        %v886 = vadd.f32 %v884, %v885
        %887 = vadd.xlane.f32.xlu0 %v886
        %v888 = vpop.xlane.xlu0 %887
        %v890 = vsel %vm878, %v567, 0
        %v893 = vsel %vm878, %v568, 0
        %895 = vmatprep.subr.mxu0 0.0
        %896 = vmatpush1.msra.mxu0 %v882
        %897 = vmatprep.subr.mxu0 0.0
        %898 = vmatpush1.msra.mxu0 %v888
        %899 = vmatprep.subr.mxu0 0.0
        %900 = vmatpush1.msra.mxu0 0.0
        %901 = vmatprep.subr.mxu0 0.0
        %902 = vmatpush1.msra.mxu0 0.0
        %903 = vmatprep.subr.mxu0 0.0
        %904 = vmatpush1.msra.mxu0 0.0
        %905 = vmatprep.subr.mxu0 0.0
        %906 = vmatpush1.msra.mxu0 0.0
        %907 = vmatprep.subr.mxu0 0.0
        %908 = vmatpush1.msra.mxu0 0.0
        %909 = vmatprep.subr.mxu0 0.0
        %910 = vmatpush1.msra.mxu0 0.0
        %911 = vmatprep.subr.mxu0 0.0
        %912 = vmatpush1.msra.mxu0 0.0
        %913 = vmatprep.subr.mxu0 0.0
        %914 = vmatpush1.msra.mxu0 0.0
        %915 = vmatprep.subr.mxu0 0.0
        %916 = vmatpush1.msra.mxu0 0.0
        %917 = vmatprep.subr.mxu0 0.0
        %918 = vmatpush1.msra.mxu0 0.0
        %919 = vmatprep.subr.mxu0 0.0
        %920 = vmatpush1.msra.mxu0 0.0
        %921 = vmatprep.subr.mxu0 0.0
        %922 = vmatpush1.msra.mxu0 0.0
        %923 = vmatprep.subr.mxu0 0.0
        %924 = vmatpush1.msra.mxu0 0.0
        %925 = vmatprep.subr.mxu0 0.0
        %926 = vmatpush1.msra.mxu0 0.0
        %927 = vmatprep.subr.mxu0 0.0
        %928 = vmatpush1.msra.mxu0 0.0
        %929 = vmatprep.subr.mxu0 0.0
        %930 = vmatpush1.msra.mxu0 0.0
        %931 = vmatprep.subr.mxu0 0.0
        %932 = vmatpush1.msra.mxu0 0.0
        %933 = vmatprep.subr.mxu0 0.0
        %934 = vmatpush1.msra.mxu0 0.0
        %935 = vmatprep.subr.mxu0 0.0
        %936 = vmatpush1.msra.mxu0 0.0
        %937 = vmatprep.subr.mxu0 0.0
        %938 = vmatpush1.msra.mxu0 0.0
        %939 = vmatprep.subr.mxu0 0.0
        %940 = vmatpush1.msra.mxu0 0.0
        %941 = vmatprep.subr.mxu0 0.0
        %942 = vmatpush1.msra.mxu0 0.0
        %943 = vmatprep.subr.mxu0 0.0
        %944 = vmatpush1.msra.mxu0 0.0
        %945 = vmatprep.subr.mxu0 0.0
        %946 = vmatpush1.msra.mxu0 0.0
        %947 = vmatprep.subr.mxu0 0.0
        %948 = vmatpush1.msra.mxu0 0.0
        %949 = vmatprep.subr.mxu0 0.0
        %950 = vmatpush1.msra.mxu0 0.0
        %951 = vmatprep.subr.mxu0 0.0
        %952 = vmatpush1.msra.mxu0 0.0
        %953 = vmatprep.subr.mxu0 0.0
        %954 = vmatpush1.msra.mxu0 0.0
        %955 = vmatprep.subr.mxu0 0.0
        %956 = vmatpush1.msra.mxu0 0.0
        %957 = vmatprep.subr.mxu0 0.0
        %958 = vmatpush1.msra.mxu0 0.0
        %959 = vmatprep.mubr.f32.mxu0 0.0
        %960 = vmatmul.mubr.f32.gmra.mrb[0].mxu0 %v890
        %v961 = vpop.f32.mrb[0].mxu0
        %v962 = vadd.f32 0.0, %v961
        %v963 = vpop.f32.mrb[0].mxu0
        %964 = vmatprep.mubr.f32.mxu0 0.0
        %965 = vmatmul.mubr.f32.gmra.mrb[0].mxu0 %v893
        %v966 = vpop.f32.mrb[0].mxu0
        %v967 = vadd.f32 0.0, %v966
        %v968 = vpop.f32.mrb[0].mxu0
        %969 = vdwg.mxu0
        %971 = vset.pattern.permute.xlu0 0
        %972 = vperm.xlu0 %971, %v962
        %v973 = vpop.permute.xlu0 %972
        %976 = vset.pattern.permute.xlu0 0
        %977 = vperm.xlu0 %976, %v967
        %v978 = vpop.permute.xlu0 %977
        %v980 = vsub.f32 %v792, %v973
        %v981 = vsub.f32 %v794, %v973
        %v982 = vsub.f32 %v835, %v973
        %v983 = vsub.f32 %v837, %v973
        %v984 = vsub.f32 %v796, %v978
        %v985 = vsub.f32 %v798, %v978
        %v986 = vsub.f32 %v839, %v978
        %v987 = vsub.f32 %v841, %v978
        %v988 = vmul.f32 %v980, %v980
        %v989 = vmul.f32 %v981, %v981
        %v990 = vmul.f32 %v982, %v982
        %v991 = vmul.f32 %v983, %v983
        %v992 = vmul.f32 %v984, %v984
        %v993 = vmul.f32 %v985, %v985
        %v994 = vmul.f32 %v986, %v986
        %v995 = vmul.f32 %v987, %v987
        %v996 = vmul.f32 %v988, %v851
        %v997 = vmul.f32 %v989, %v855
        %v998 = vmul.f32 %v990, %v859
        %v999 = vmul.f32 %v991, %v863
        %v1000 = vmul.f32 %v992, %v851
        %v1001 = vmul.f32 %v993, %v855
        %v1002 = vmul.f32 %v994, %v859
        %v1003 = vmul.f32 %v995, %v863
        %v1004 = vadd.f32 %v996, %v997
        %v1005 = vadd.f32 %v1004, %v998
        %v1006 = vsel %vm878, %v999, 0.0
        %v1007 = vadd.f32 %v1005, %v1006
        %1008 = vadd.xlane.f32.xlu0 %v1007
        %v1009 = vpop.xlane.xlu0 %1008
        %v1010 = vadd.f32 %v1000, %v1001
        %v1011 = vadd.f32 %v1010, %v1002
        %v1012 = vsel %vm878, %v1003, 0.0
        %v1013 = vadd.f32 %v1011, %v1012
        %1014 = vadd.xlane.f32.xlu0 %v1013
        %v1015 = vpop.xlane.xlu0 %1014
        %1016 = vmatprep.subr.mxu0 0.0
        %1017 = vmatpush1.msra.mxu0 %v1009
        %1018 = vmatprep.subr.mxu0 0.0
        %1019 = vmatpush1.msra.mxu0 %v1015
        %1020 = vmatprep.subr.mxu0 0.0
        %1021 = vmatpush1.msra.mxu0 0.0
        %1022 = vmatprep.subr.mxu0 0.0
        %1023 = vmatpush1.msra.mxu0 0.0
        %1024 = vmatprep.subr.mxu0 0.0
        %1025 = vmatpush1.msra.mxu0 0.0
        %1026 = vmatprep.subr.mxu0 0.0
        %1027 = vmatpush1.msra.mxu0 0.0
        %1028 = vmatprep.subr.mxu0 0.0
        %1029 = vmatpush1.msra.mxu0 0.0
        %1030 = vmatprep.subr.mxu0 0.0
        %1031 = vmatpush1.msra.mxu0 0.0
        %1032 = vmatprep.subr.mxu0 0.0
        %1033 = vmatpush1.msra.mxu0 0.0
        %1034 = vmatprep.subr.mxu0 0.0
        %1035 = vmatpush1.msra.mxu0 0.0
        %1036 = vmatprep.subr.mxu0 0.0
        %1037 = vmatpush1.msra.mxu0 0.0
        %1038 = vmatprep.subr.mxu0 0.0
        %1039 = vmatpush1.msra.mxu0 0.0
        %1040 = vmatprep.subr.mxu0 0.0
        %1041 = vmatpush1.msra.mxu0 0.0
        %1042 = vmatprep.subr.mxu0 0.0
        %1043 = vmatpush1.msra.mxu0 0.0
        %1044 = vmatprep.subr.mxu0 0.0
        %1045 = vmatpush1.msra.mxu0 0.0
        %1046 = vmatprep.subr.mxu0 0.0
        %1047 = vmatpush1.msra.mxu0 0.0
        %1048 = vmatprep.subr.mxu0 0.0
        %1049 = vmatpush1.msra.mxu0 0.0
        %1050 = vmatprep.subr.mxu0 0.0
        %1051 = vmatpush1.msra.mxu0 0.0
        %1052 = vmatprep.subr.mxu0 0.0
        %1053 = vmatpush1.msra.mxu0 0.0
        %1054 = vmatprep.subr.mxu0 0.0
        %1055 = vmatpush1.msra.mxu0 0.0
        %1056 = vmatprep.subr.mxu0 0.0
        %1057 = vmatpush1.msra.mxu0 0.0
        %1058 = vmatprep.subr.mxu0 0.0
        %1059 = vmatpush1.msra.mxu0 0.0
        %1060 = vmatprep.subr.mxu0 0.0
        %1061 = vmatpush1.msra.mxu0 0.0
        %1062 = vmatprep.subr.mxu0 0.0
        %1063 = vmatpush1.msra.mxu0 0.0
        %1064 = vmatprep.subr.mxu0 0.0
        %1065 = vmatpush1.msra.mxu0 0.0
        %1066 = vmatprep.subr.mxu0 0.0
        %1067 = vmatpush1.msra.mxu0 0.0
        %1068 = vmatprep.subr.mxu0 0.0
        %1069 = vmatpush1.msra.mxu0 0.0
        %1070 = vmatprep.subr.mxu0 0.0
        %1071 = vmatpush1.msra.mxu0 0.0
        %1072 = vmatprep.subr.mxu0 0.0
        %1073 = vmatpush1.msra.mxu0 0.0
        %1074 = vmatprep.subr.mxu0 0.0
        %1075 = vmatpush1.msra.mxu0 0.0
        %1076 = vmatprep.subr.mxu0 0.0
        %1077 = vmatpush1.msra.mxu0 0.0
        %1078 = vmatprep.subr.mxu0 0.0
        %1079 = vmatpush1.msra.mxu0 0.0
        %1080 = vmatprep.mubr.f32.mxu0 0.0
        %1081 = vmatmul.mubr.f32.gmra.mrb[0].mxu0 %v890
        %v1082 = vpop.f32.mrb[0].mxu0
        %v1083 = vadd.f32 1e-05, %v1082
        %v1084 = vpop.f32.mrb[0].mxu0
        %1085 = vmatprep.mubr.f32.mxu0 0.0
        %1086 = vmatmul.mubr.f32.gmra.mrb[0].mxu0 %v893
        %v1087 = vpop.f32.mrb[0].mxu0
        %v1088 = vadd.f32 1e-05, %v1087
        %v1089 = vpop.f32.mrb[0].mxu0
        %1090 = vdwg.mxu0
        %v1091 = vrsqrt.pop %v1083
        %v1092 = vrsqrt.pop %v1088
        %1094 = vset.pattern.permute.xlu0 0
        %1095 = vperm.xlu0 %1094, %v1091
        %v1096 = vpop.permute.xlu0 %1095
        %1099 = vset.pattern.permute.xlu0 0
        %1100 = vperm.xlu0 %1099, %v1092
        %v1101 = vpop.permute.xlu0 %1100
        %v1103 = vmul.f32 %v980, %v1096
        %v1104 = vmul.f32 %v981, %v1096
        %v1105 = vmul.f32 %v982, %v1096
        %v1106 = vmul.f32 %v984, %v1101
        %v1107 = vmul.f32 %v985, %v1101
        %v1108 = vmul.f32 %v986, %v1101
        %1110 = vset.pattern.permute.xlu0 0
        %1111 = vperm.xlu0 %1110, %v843
        %v1112 = vpop.permute.xlu0 %1111
        %1115 = vset.pattern.permute.xlu0 0
        %1116 = vperm.xlu0 %1115, %v844
        %v1117 = vpop.permute.xlu0 %1116
        %v1119 = vmul.f32 %v1103, %v1112
        %v1120 = vmul.f32 %v1104, %v1112
        %v1121 = vmul.f32 %v1105, %v1112
        %v1122 = vmul.f32 %v1106, %v1117
        %v1123 = vmul.f32 %v1107, %v1117
        %v1124 = vmul.f32 %v1108, %v1117
        %1126 = vset.pattern.permute.xlu0 0
        %1127 = vperm.xlu0 %1126, %v845
        %v1128 = vpop.permute.xlu0 %1127
        %1131 = vset.pattern.permute.xlu0 0
        %1132 = vperm.xlu0 %1131, %v846
        %v1133 = vpop.permute.xlu0 %1132
        %v1135 = vadd.f32 %v1119, %v1128
        %v1136 = vadd.f32 %v1120, %v1128
        %v1137 = vadd.f32 %v1121, %v1128
        %v1138 = vadd.f32 %v1122, %v1133
        %v1139 = vadd.f32 %v1123, %v1133
        %v1140 = vadd.f32 %v1124, %v1133
        %v1141 = vld [vmem:[%s554] sm:$0xff]
        %v1142 = vld [vmem:[%s554 + $0x8] sm:$0xff]
        %1144 = vset.pattern.permute.xlu0 0
        %1145 = vperm.xlu0 %1144, %v1141
        %v1146 = vpop.permute.xlu0 %1145
        %1149 = vset.pattern.permute.xlu0 0
        %1150 = vperm.xlu0 %1149, %v1142
        %v1151 = vpop.permute.xlu0 %1150
        %v1153 = vmul.f32 %v1146, %v1135
        %v1154 = vmul.f32 %v1146, %v1136
        %v1155 = vmul.f32 %v1146, %v1137
        %v1156 = vmul.f32 %v1151, %v1138
        %v1157 = vmul.f32 %v1151, %v1139
        %v1158 = vmul.f32 %v1151, %v1140
        %v1159 = vld [vmem:[%s559] sm:$0xff]
        %v1160 = vld [vmem:[%s559 + $0x8] sm:$0xff]
        %1162 = vset.pattern.permute.xlu0 0
        %1163 = vperm.xlu0 %1162, %v1159
        %v1164 = vpop.permute.xlu0 %1163
        %1167 = vset.pattern.permute.xlu0 0
        %1168 = vperm.xlu0 %1167, %v1160
        %v1169 = vpop.permute.xlu0 %1168
        %v1171 = vadd.f32 %v1153, %v1164
        %v1172 = vadd.f32 %v1154, %v1164
        %v1173 = vadd.f32 %v1155, %v1164
        %v1174 = vadd.f32 %v1156, %v1169
        %v1175 = vadd.f32 %v1157, %v1169
        %v1176 = vadd.f32 %v1158, %v1169
        %v1177 = vmax.f32 %v1171, 0.0
        %v1178 = vmax.f32 %v1172, 0.0
        %v1179 = vmax.f32 %v1173, 0.0
        %v1180 = vmax.f32 %v1174, 0.0
        %v1181 = vmax.f32 %v1175, 0.0
        %v1182 = vmax.f32 %v1176, 0.0
        %v1183 = vmul.f32 %v851, %v1177
        %v1184 = vmul.f32 %v855, %v1178
        %v1185 = vmul.f32 %v859, %v1179
        %v1186 = vmul.f32 %v851, %v1180
        %v1187 = vmul.f32 %v855, %v1181
        %v1188 = vmul.f32 %v859, %v1182
        %1195 = vrot.lane.b32.xlu0 %v1183, 127
        %v1196 = vpop.permute.xlu0 %1195
        %1197 = vrot.lane.b32.xlu0 %v1184, 127
        %v1198 = vpop.permute.xlu0 %1197
        %1199 = vrot.lane.b32.xlu0 %v1185, 127
        %v1200 = vpop.permute.xlu0 %1199
        %1201 = vrot.lane.b32.xlu0 %v1186, 127
        %v1202 = vpop.permute.xlu0 %1201
        %1203 = vrot.lane.b32.xlu0 %v1187, 127
        %v1204 = vpop.permute.xlu0 %1203
        %1205 = vrot.lane.b32.xlu0 %v1188, 127
        %v1206 = vpop.permute.xlu0 %1205
        %v1207 = vsel %vm581, %v1196, %v1198
        %v1208 = vsel %vm581, %v1198, %v1200
        %v1209 = vsel %vm581, %v1202, %v1204
        %v1210 = vsel %vm581, %v1204, %v1206
        %1217 = vrot.lane.b32.xlu0 %v1183, 126
        %v1218 = vpop.permute.xlu0 %1217
        %1219 = vrot.lane.b32.xlu0 %v1184, 126
        %v1220 = vpop.permute.xlu0 %1219
        %1221 = vrot.lane.b32.xlu0 %v1185, 126
        %v1222 = vpop.permute.xlu0 %1221
        %1223 = vrot.lane.b32.xlu0 %v1186, 126
        %v1224 = vpop.permute.xlu0 %1223
        %1225 = vrot.lane.b32.xlu0 %v1187, 126
        %v1226 = vpop.permute.xlu0 %1225
        %1227 = vrot.lane.b32.xlu0 %v1188, 126
        %v1228 = vpop.permute.xlu0 %1227
        %v1229 = vsel %vm597, %v1218, %v1220
        %v1230 = vsel %vm597, %v1220, %v1222
        %v1231 = vsel %vm597, %v1224, %v1226
        %v1232 = vsel %vm597, %v1226, %v1228
        %1239 = vrot.lane.b32.xlu0 %v1183, 108
        %v1240 = vpop.permute.xlu0 %1239
        %1241 = vrot.lane.b32.xlu0 %v1184, 108
        %v1242 = vpop.permute.xlu0 %1241
        %1243 = vrot.lane.b32.xlu0 %v1185, 108
        %v1244 = vpop.permute.xlu0 %1243
        %1245 = vrot.lane.b32.xlu0 %v1186, 108
        %v1246 = vpop.permute.xlu0 %1245
        %1247 = vrot.lane.b32.xlu0 %v1187, 108
        %v1248 = vpop.permute.xlu0 %1247
        %1249 = vrot.lane.b32.xlu0 %v1188, 108
        %v1250 = vpop.permute.xlu0 %1249
        %v1251 = vsel %vm613, %v1240, %v1242
        %v1252 = vsel %vm613, %v1242, %v1244
        %v1253 = vsel %vm613, %v1246, %v1248
        %v1254 = vsel %vm613, %v1248, %v1250
        %1261 = vrot.lane.b32.xlu0 %v1183, 107
        %v1262 = vpop.permute.xlu0 %1261
        %1263 = vrot.lane.b32.xlu0 %v1184, 107
        %v1264 = vpop.permute.xlu0 %1263
        %1265 = vrot.lane.b32.xlu0 %v1185, 107
        %v1266 = vpop.permute.xlu0 %1265
        %1267 = vrot.lane.b32.xlu0 %v1186, 107
        %v1268 = vpop.permute.xlu0 %1267
        %1269 = vrot.lane.b32.xlu0 %v1187, 107
        %v1270 = vpop.permute.xlu0 %1269
        %1271 = vrot.lane.b32.xlu0 %v1188, 107
        %v1272 = vpop.permute.xlu0 %1271
        %v1273 = vsel %vm629, %v1262, %v1264
        %v1274 = vsel %vm629, %v1264, %v1266
        %v1275 = vsel %vm629, %v1268, %v1270
        %v1276 = vsel %vm629, %v1270, %v1272
        %1283 = vrot.lane.b32.xlu0 %v1183, 106
        %v1284 = vpop.permute.xlu0 %1283
        %1285 = vrot.lane.b32.xlu0 %v1184, 106
        %v1286 = vpop.permute.xlu0 %1285
        %1287 = vrot.lane.b32.xlu0 %v1185, 106
        %v1288 = vpop.permute.xlu0 %1287
        %1289 = vrot.lane.b32.xlu0 %v1186, 106
        %v1290 = vpop.permute.xlu0 %1289
        %1291 = vrot.lane.b32.xlu0 %v1187, 106
        %v1292 = vpop.permute.xlu0 %1291
        %1293 = vrot.lane.b32.xlu0 %v1188, 106
        %v1294 = vpop.permute.xlu0 %1293
        %v1295 = vsel %vm645, %v1284, %v1286
        %v1296 = vsel %vm645, %v1286, %v1288
        %v1297 = vsel %vm645, %v1290, %v1292
        %v1298 = vsel %vm645, %v1292, %v1294
        %1305 = vrot.lane.b32.xlu0 %v1183, 88
        %v1306 = vpop.permute.xlu0 %1305
        %1307 = vrot.lane.b32.xlu0 %v1184, 88
        %v1308 = vpop.permute.xlu0 %1307
        %1309 = vrot.lane.b32.xlu0 %v1185, 88
        %v1310 = vpop.permute.xlu0 %1309
        %1311 = vrot.lane.b32.xlu0 %v1186, 88
        %v1312 = vpop.permute.xlu0 %1311
        %1313 = vrot.lane.b32.xlu0 %v1187, 88
        %v1314 = vpop.permute.xlu0 %1313
        %1315 = vrot.lane.b32.xlu0 %v1188, 88
        %v1316 = vpop.permute.xlu0 %1315
        %v1317 = vsel %vm661, %v1306, %v1308
        %v1318 = vsel %vm661, %v1308, %v1310
        %v1319 = vsel %vm661, %v1312, %v1314
        %v1320 = vsel %vm661, %v1314, %v1316
        %1327 = vrot.lane.b32.xlu0 %v1183, 87
        %v1328 = vpop.permute.xlu0 %1327
        %1329 = vrot.lane.b32.xlu0 %v1184, 87
        %v1330 = vpop.permute.xlu0 %1329
        %1331 = vrot.lane.b32.xlu0 %v1185, 87
        %v1332 = vpop.permute.xlu0 %1331
        %1333 = vrot.lane.b32.xlu0 %v1186, 87
        %v1334 = vpop.permute.xlu0 %1333
        %1335 = vrot.lane.b32.xlu0 %v1187, 87
        %v1336 = vpop.permute.xlu0 %1335
        %1337 = vrot.lane.b32.xlu0 %v1188, 87
        %v1338 = vpop.permute.xlu0 %1337
        %v1339 = vsel %vm677, %v1328, %v1330
        %v1340 = vsel %vm677, %v1330, %v1332
        %v1341 = vsel %vm677, %v1334, %v1336
        %v1342 = vsel %vm677, %v1336, %v1338
        %1349 = vrot.lane.b32.xlu0 %v1183, 86
        %v1350 = vpop.permute.xlu0 %1349
        %1351 = vrot.lane.b32.xlu0 %v1184, 86
        %v1352 = vpop.permute.xlu0 %1351
        %1353 = vrot.lane.b32.xlu0 %v1185, 86
        %v1354 = vpop.permute.xlu0 %1353
        %1355 = vrot.lane.b32.xlu0 %v1186, 86
        %v1356 = vpop.permute.xlu0 %1355
        %1357 = vrot.lane.b32.xlu0 %v1187, 86
        %v1358 = vpop.permute.xlu0 %1357
        %1359 = vrot.lane.b32.xlu0 %v1188, 86
        %v1360 = vpop.permute.xlu0 %1359
        %v1361 = vsel %vm693, %v1350, %v1352
        %v1362 = vsel %vm693, %v1352, %v1354
        %v1363 = vsel %vm693, %v1356, %v1358
        %v1364 = vsel %vm693, %v1358, %v1360
        %v1371 = vld [vmem:[%s10] sm:$0xff]
        %v1372 = vld [vmem:[%s10 + $0x8] sm:$0xff]
        %v1373 = vpack.c.bf16 %v1186, %v1183
        %v1374 = vpack.c.bf16 %v1187, %v1184
        %v1375 = vpack.c.bf16 %v1188, %v1185
        %v1376 = vpack.c.bf16 %v1209, %v1207
        %v1377 = vpack.c.bf16 %v1210, %v1208
        %v1378 = vpack.c.bf16 %v1206, %v1200
        %v1379 = vpack.c.bf16 %v1231, %v1229
        %v1380 = vpack.c.bf16 %v1232, %v1230
        %v1381 = vpack.c.bf16 %v1228, %v1222
        %v1382 = vpack.c.bf16 %v1253, %v1251
        %v1383 = vpack.c.bf16 %v1254, %v1252
        %v1384 = vpack.c.bf16 %v1250, %v1244
        %v1385 = vpack.c.bf16 %v1275, %v1273
        %v1386 = vpack.c.bf16 %v1276, %v1274
        %v1387 = vpack.c.bf16 %v1272, %v1266
        %v1388 = vpack.c.bf16 %v1297, %v1295
        %v1389 = vpack.c.bf16 %v1298, %v1296
        %v1390 = vpack.c.bf16 %v1294, %v1288
        %v1391 = vpack.c.bf16 %v1319, %v1317
        %v1392 = vpack.c.bf16 %v1320, %v1318
        %v1393 = vpack.c.bf16 %v1316, %v1310
        %v1394 = vpack.c.bf16 %v1341, %v1339
        %v1395 = vpack.c.bf16 %v1342, %v1340
        %v1396 = vpack.c.bf16 %v1338, %v1332
        %v1397 = vpack.c.bf16 %v1363, %v1361
        %v1398 = vpack.c.bf16 %v1364, %v1362
        %v1399 = vpack.c.bf16 %v1360, %v1354
        %v1400 = vld [vmem:[%s11] sm:$0xff]
        %v1401 = vld [vmem:[%s11 + $0x8] sm:$0xff]
        %1403 = vset.pattern.permute.xlu0 0
        %1404 = vperm.xlu0 %1403, %v1400
        %v1405 = vpop.permute.xlu0 %1404
        %1408 = vset.pattern.permute.xlu0 0
        %1409 = vperm.xlu0 %1408, %v1401
        %v1410 = vpop.permute.xlu0 %1409
        %v1414 = vunpack.c.l.b16 %v1371
        %v1415 = vunpack.c.h.b16 %v1371
        %v1416 = vunpack.c.l.b16 %v1372
        %v1417 = vunpack.c.h.b16 %v1372
        %v1418 = vpack.c.b16 %v1416, %v1414
        %v1419 = vpack.c.b16 %v1417, %v1415
        %1448 = vrot.lane.b32.xlu0 %v1373, 109
        %v1449 = vpop.permute.xlu0 %1448
        %1450 = vrot.lane.b32.xlu0 %v1374, 109
        %v1451 = vpop.permute.xlu0 %1450
        %1452 = vrot.lane.b32.xlu0 %v1375, 109
        %v1453 = vpop.permute.xlu0 %1452
        %1454 = vrot.lane.b32.xlu0 %v1376, 109
        %v1455 = vpop.permute.xlu0 %1454
        %1456 = vrot.lane.b32.xlu0 %v1377, 109
        %v1457 = vpop.permute.xlu0 %1456
        %1458 = vrot.lane.b32.xlu0 %v1378, 109
        %v1459 = vpop.permute.xlu0 %1458
        %1460 = vrot.lane.b32.xlu0 %v1379, 109
        %v1461 = vpop.permute.xlu0 %1460
        %1462 = vrot.lane.b32.xlu0 %v1380, 109
        %v1463 = vpop.permute.xlu0 %1462
        %1464 = vrot.lane.b32.xlu0 %v1381, 109
        %v1465 = vpop.permute.xlu0 %1464
        %1466 = vrot.lane.b32.xlu0 %v1382, 109
        %v1467 = vpop.permute.xlu0 %1466
        %1468 = vrot.lane.b32.xlu0 %v1383, 109
        %v1469 = vpop.permute.xlu0 %1468
        %1470 = vrot.lane.b32.xlu0 %v1384, 109
        %v1471 = vpop.permute.xlu0 %1470
        %1472 = vrot.lane.b32.xlu0 %v1385, 109
        %v1473 = vpop.permute.xlu0 %1472
        %1474 = vrot.lane.b32.xlu0 %v1386, 109
        %v1475 = vpop.permute.xlu0 %1474
        %1476 = vrot.lane.b32.xlu0 %v1387, 109
        %v1477 = vpop.permute.xlu0 %1476
        %1478 = vrot.lane.b32.xlu0 %v1388, 109
        %v1479 = vpop.permute.xlu0 %1478
        %1480 = vrot.lane.b32.xlu0 %v1389, 109
        %v1481 = vpop.permute.xlu0 %1480
        %1482 = vrot.lane.b32.xlu0 %v1390, 109
        %v1483 = vpop.permute.xlu0 %1482
        %1484 = vrot.lane.b32.xlu0 %v1391, 109
        %v1485 = vpop.permute.xlu0 %1484
        %1486 = vrot.lane.b32.xlu0 %v1392, 109
        %v1487 = vpop.permute.xlu0 %1486
        %1488 = vrot.lane.b32.xlu0 %v1393, 109
        %v1489 = vpop.permute.xlu0 %1488
        %1490 = vrot.lane.b32.xlu0 %v1394, 109
        %v1491 = vpop.permute.xlu0 %1490
        %1492 = vrot.lane.b32.xlu0 %v1395, 109
        %v1493 = vpop.permute.xlu0 %1492
        %1494 = vrot.lane.b32.xlu0 %v1396, 109
        %v1495 = vpop.permute.xlu0 %1494
        %1496 = vrot.lane.b32.xlu0 %v1397, 109
        %v1497 = vpop.permute.xlu0 %1496
        %1498 = vrot.lane.b32.xlu0 %v1398, 109
        %v1499 = vpop.permute.xlu0 %1498
        %1500 = vrot.lane.b32.xlu0 %v1399, 109
        %v1501 = vpop.permute.xlu0 %1500
        %vm1502 = vcmask 891904
        %v1503 = vsel %vm1502, %v1449, %v1451
        %v1504 = vsel %vm1502, %v1451, %v1453
        %v1505 = vsel %vm1502, %v1455, %v1457
        %v1506 = vsel %vm1502, %v1457, %v1459
        %v1507 = vsel %vm1502, %v1461, %v1463
        %v1508 = vsel %vm1502, %v1463, %v1465
        %v1509 = vsel %vm1502, %v1467, %v1469
        %v1510 = vsel %vm1502, %v1469, %v1471
        %v1511 = vsel %vm1502, %v1473, %v1475
        %v1512 = vsel %vm1502, %v1475, %v1477
        %v1513 = vsel %vm1502, %v1479, %v1481
        %v1514 = vsel %vm1502, %v1481, %v1483
        %v1515 = vsel %vm1502, %v1485, %v1487
        %v1516 = vsel %vm1502, %v1487, %v1489
        %v1517 = vsel %vm1502, %v1491, %v1493
        %v1518 = vsel %vm1502, %v1493, %v1495
        %v1519 = vsel %vm1502, %v1497, %v1499
        %v1520 = vsel %vm1502, %v1499, %v1501
        %v1549 = vsel %vm878, %v1419, 0
        %1551 = vmatprep.subr.bf16.mxu0 %v1504
        %1552 = vmatpush1.bf16.msra.mxu0 %v1503
        %1553 = vmatprep.subr.bf16.mxu0 %v1506
        %1554 = vmatpush1.bf16.msra.mxu0 %v1505
        %1555 = vmatprep.subr.bf16.mxu0 %v1508
        %1556 = vmatpush1.bf16.msra.mxu0 %v1507
        %1557 = vmatprep.subr.bf16.mxu0 %v1510
        %1558 = vmatpush1.bf16.msra.mxu0 %v1509
        %1559 = vmatprep.subr.bf16.mxu0 %v1512
        %1560 = vmatpush1.bf16.msra.mxu0 %v1511
        %1561 = vmatprep.subr.bf16.mxu0 %v1514
        %1562 = vmatpush1.bf16.msra.mxu0 %v1513
        %1563 = vmatprep.subr.bf16.mxu0 %v1516
        %1564 = vmatpush1.bf16.msra.mxu0 %v1515
        %1565 = vmatprep.subr.bf16.mxu0 %v1518
        %1566 = vmatpush1.bf16.msra.mxu0 %v1517
        %1567 = vmatprep.subr.bf16.mxu0 %v1520
        %1568 = vmatpush1.bf16.msra.mxu0 %v1519
        %1569 = vmatprep.subr.bf16.mxu0 0
        %1570 = vmatpush1.bf16.msra.mxu0 0
        %1571 = vmatprep.subr.bf16.mxu0 0
        %1572 = vmatpush1.bf16.msra.mxu0 0
        %1573 = vmatprep.subr.bf16.mxu0 0
        %1574 = vmatpush1.bf16.msra.mxu0 0
        %1575 = vmatprep.subr.bf16.mxu0 0
        %1576 = vmatpush1.bf16.msra.mxu0 0
        %1577 = vmatprep.subr.bf16.mxu0 0
        %1578 = vmatpush1.bf16.msra.mxu0 0
        %1579 = vmatprep.subr.bf16.mxu0 0
        %1580 = vmatpush1.bf16.msra.mxu0 0
        %1581 = vmatprep.subr.bf16.mxu0 0
        %1582 = vmatpush1.bf16.msra.mxu0 0
        %1583 = vmatprep.mubr.bf16.mxu0 %v1549
        %1584 = vmatmul.mubr.bf16.gmra.mrb[0].mxu0 %v1418
        %v1585 = vpop.f32.mrb[0].mxu0
        %v1586 = vadd.f32 %v1405, %v1585
        %v1587 = vpop.f32.mrb[0].mxu0
        %v1588 = vadd.f32 %v1405, %v1587
        %v1589 = vpop.f32.mrb[0].mxu0
        %v1590 = vadd.f32 %v1410, %v1589
        %v1591 = vpop.f32.mrb[0].mxu0
        %v1592 = vadd.f32 %v1410, %v1591
        %1593 = vdwg.mxu0
        %1594 = vmatprep.subr.bf16.mxu0 0
        %1595 = vmatpush1.bf16.msra.mxu0 %v1453
        %1596 = vmatprep.subr.bf16.mxu0 0
        %1597 = vmatpush1.bf16.msra.mxu0 %v1459
        %1598 = vmatprep.subr.bf16.mxu0 0
        %1599 = vmatpush1.bf16.msra.mxu0 %v1465
        %1600 = vmatprep.subr.bf16.mxu0 0
        %1601 = vmatpush1.bf16.msra.mxu0 %v1471
        %1602 = vmatprep.subr.bf16.mxu0 0
        %1603 = vmatpush1.bf16.msra.mxu0 %v1477
        %1604 = vmatprep.subr.bf16.mxu0 0
        %1605 = vmatpush1.bf16.msra.mxu0 %v1483
        %1606 = vmatprep.subr.bf16.mxu0 0
        %1607 = vmatpush1.bf16.msra.mxu0 %v1489
        %1608 = vmatprep.subr.bf16.mxu0 0
        %1609 = vmatpush1.bf16.msra.mxu0 %v1495
        %1610 = vmatprep.subr.bf16.mxu0 0
        %1611 = vmatpush1.bf16.msra.mxu0 %v1501
        %1612 = vmatprep.subr.bf16.mxu0 0
        %1613 = vmatpush1.bf16.msra.mxu0 0
        %1614 = vmatprep.subr.bf16.mxu0 0
        %1615 = vmatpush1.bf16.msra.mxu0 0
        %1616 = vmatprep.subr.bf16.mxu0 0
        %1617 = vmatpush1.bf16.msra.mxu0 0
        %1618 = vmatprep.subr.bf16.mxu0 0
        %1619 = vmatpush1.bf16.msra.mxu0 0
        %1620 = vmatprep.subr.bf16.mxu0 0
        %1621 = vmatpush1.bf16.msra.mxu0 0
        %1622 = vmatprep.subr.bf16.mxu0 0
        %1623 = vmatpush1.bf16.msra.mxu0 0
        %1624 = vmatprep.subr.bf16.mxu0 0
        %1625 = vmatpush1.bf16.msra.mxu0 0
        %1626 = vmatprep.mubr.bf16.mxu0 %v1549
        %1627 = vmatmul.mubr.bf16.gmra.mrb[0].mxu0 %v1418
        %v1628 = vpop.f32.mrb[0].mxu0
        %v1629 = vadd.f32 %v1405, %v1628
        %v1630 = vpop.f32.mrb[0].mxu0
        %v1631 = vpop.f32.mrb[0].mxu0
        %v1632 = vadd.f32 %v1410, %v1631
        %v1633 = vpop.f32.mrb[0].mxu0
        %1634 = vdwg.mxu0
        %v1635 = vld [vmem:[%s12] sm:$0xff]
        %v1636 = vld [vmem:[%s12 + $0x8] sm:$0xff]
        %v1637 = vld [vmem:[%s13] sm:$0xff]
        %v1638 = vld [vmem:[%s13 + $0x8] sm:$0xff]
        %v1640 = vlaneseq
        %v1641 = vshrl.u32 %v1640, 7
        %v1642 = vsub.s32 0, %v1641
        %v1643 = vrot.slane %v566, %v1642
        %v1644 = vlaneseq
        %v1645 = vshrl.u32 %v1644, 7
        %v1646 = vsub.s32 1, %v1645
        %v1647 = vrot.slane %v566, %v1646
        %v1648 = vlaneseq
        %v1649 = vshrl.u32 %v1648, 7
        %v1650 = vsub.s32 2, %v1649
        %v1651 = vrot.slane %v566, %v1650
        %v1655 = vmul.f32 %v1586, %v1643
        %v1656 = vmul.f32 %v1588, %v1647
        %v1657 = vmul.f32 %v1629, %v1651
        %v1658 = vmul.f32 %v1590, %v1643
        %v1659 = vmul.f32 %v1592, %v1647
        %v1660 = vmul.f32 %v1632, %v1651
        %v1661 = vadd.f32 %v1655, %v1656
        %vm1662 = vcmask 523264
        %v1663 = vsel %vm1662, %v1657, 0.0
        %v1664 = vadd.f32 %v1661, %v1663
        %1665 = vadd.xlane.f32.xlu0 %v1664
        %v1666 = vpop.xlane.xlu0 %1665
        %v1667 = vadd.f32 %v1658, %v1659
        %v1668 = vsel %vm1662, %v1660, 0.0
        %v1669 = vadd.f32 %v1667, %v1668
        %1670 = vadd.xlane.f32.xlu0 %v1669
        %v1671 = vpop.xlane.xlu0 %1670
        %1672 = vmatprep.subr.mxu0 0.0
        %1673 = vmatpush1.msra.mxu0 %v1666
        %1674 = vmatprep.subr.mxu0 0.0
        %1675 = vmatpush1.msra.mxu0 %v1671
        %1676 = vmatprep.subr.mxu0 0.0
        %1677 = vmatpush1.msra.mxu0 0.0
        %1678 = vmatprep.subr.mxu0 0.0
        %1679 = vmatpush1.msra.mxu0 0.0
        %1680 = vmatprep.subr.mxu0 0.0
        %1681 = vmatpush1.msra.mxu0 0.0
        %1682 = vmatprep.subr.mxu0 0.0
        %1683 = vmatpush1.msra.mxu0 0.0
        %1684 = vmatprep.subr.mxu0 0.0
        %1685 = vmatpush1.msra.mxu0 0.0
        %1686 = vmatprep.subr.mxu0 0.0
        %1687 = vmatpush1.msra.mxu0 0.0
        %1688 = vmatprep.subr.mxu0 0.0
        %1689 = vmatpush1.msra.mxu0 0.0
        %1690 = vmatprep.subr.mxu0 0.0
        %1691 = vmatpush1.msra.mxu0 0.0
        %1692 = vmatprep.subr.mxu0 0.0
        %1693 = vmatpush1.msra.mxu0 0.0
        %1694 = vmatprep.subr.mxu0 0.0
        %1695 = vmatpush1.msra.mxu0 0.0
        %1696 = vmatprep.subr.mxu0 0.0
        %1697 = vmatpush1.msra.mxu0 0.0
        %1698 = vmatprep.subr.mxu0 0.0
        %1699 = vmatpush1.msra.mxu0 0.0
        %1700 = vmatprep.subr.mxu0 0.0
        %1701 = vmatpush1.msra.mxu0 0.0
        %1702 = vmatprep.subr.mxu0 0.0
        %1703 = vmatpush1.msra.mxu0 0.0
        %1704 = vmatprep.subr.mxu0 0.0
        %1705 = vmatpush1.msra.mxu0 0.0
        %1706 = vmatprep.subr.mxu0 0.0
        %1707 = vmatpush1.msra.mxu0 0.0
        %1708 = vmatprep.subr.mxu0 0.0
        %1709 = vmatpush1.msra.mxu0 0.0
        %1710 = vmatprep.subr.mxu0 0.0
        %1711 = vmatpush1.msra.mxu0 0.0
        %1712 = vmatprep.subr.mxu0 0.0
        %1713 = vmatpush1.msra.mxu0 0.0
        %1714 = vmatprep.subr.mxu0 0.0
        %1715 = vmatpush1.msra.mxu0 0.0
        %1716 = vmatprep.subr.mxu0 0.0
        %1717 = vmatpush1.msra.mxu0 0.0
        %1718 = vmatprep.subr.mxu0 0.0
        %1719 = vmatpush1.msra.mxu0 0.0
        %1720 = vmatprep.subr.mxu0 0.0
        %1721 = vmatpush1.msra.mxu0 0.0
        %1722 = vmatprep.subr.mxu0 0.0
        %1723 = vmatpush1.msra.mxu0 0.0
        %1724 = vmatprep.subr.mxu0 0.0
        %1725 = vmatpush1.msra.mxu0 0.0
        %1726 = vmatprep.subr.mxu0 0.0
        %1727 = vmatpush1.msra.mxu0 0.0
        %1728 = vmatprep.subr.mxu0 0.0
        %1729 = vmatpush1.msra.mxu0 0.0
        %1730 = vmatprep.subr.mxu0 0.0
        %1731 = vmatpush1.msra.mxu0 0.0
        %1732 = vmatprep.subr.mxu0 0.0
        %1733 = vmatpush1.msra.mxu0 0.0
        %1734 = vmatprep.subr.mxu0 0.0
        %1735 = vmatpush1.msra.mxu0 0.0
        %1736 = vmatprep.mubr.f32.mxu0 0.0
        %1737 = vmatmul.mubr.f32.gmra.mrb[0].mxu0 %v890
        %v1738 = vpop.f32.mrb[0].mxu0
        %v1739 = vadd.f32 0.0, %v1738
        %v1740 = vpop.f32.mrb[0].mxu0
        %1741 = vmatprep.mubr.f32.mxu0 0.0
        %1742 = vmatmul.mubr.f32.gmra.mrb[0].mxu0 %v893
        %v1743 = vpop.f32.mrb[0].mxu0
        %v1744 = vadd.f32 0.0, %v1743
        %v1745 = vpop.f32.mrb[0].mxu0
        %1746 = vdwg.mxu0
        %1748 = vset.pattern.permute.xlu0 0
        %1749 = vperm.xlu0 %1748, %v1739
        %v1750 = vpop.permute.xlu0 %1749
        %1753 = vset.pattern.permute.xlu0 0
        %1754 = vperm.xlu0 %1753, %v1744
        %v1755 = vpop.permute.xlu0 %1754
        %v1757 = vsub.f32 %v1586, %v1750
        %v1758 = vsub.f32 %v1588, %v1750
        %v1759 = vsub.f32 %v1629, %v1750
        %v1760 = vsub.f32 %v1590, %v1755
        %v1761 = vsub.f32 %v1592, %v1755
        %v1762 = vsub.f32 %v1632, %v1755
        %v1763 = vmul.f32 %v1757, %v1757
        %v1764 = vmul.f32 %v1758, %v1758
        %v1765 = vmul.f32 %v1759, %v1759
        %v1766 = vmul.f32 %v1760, %v1760
        %v1767 = vmul.f32 %v1761, %v1761
        %v1768 = vmul.f32 %v1762, %v1762
        %v1769 = vmul.f32 %v1763, %v1643
        %v1770 = vmul.f32 %v1764, %v1647
        %v1771 = vmul.f32 %v1765, %v1651
        %v1772 = vmul.f32 %v1766, %v1643
        %v1773 = vmul.f32 %v1767, %v1647
        %v1774 = vmul.f32 %v1768, %v1651
        %v1775 = vadd.f32 %v1769, %v1770
        %v1776 = vsel %vm1662, %v1771, 0.0
        %v1777 = vadd.f32 %v1775, %v1776
        %1778 = vadd.xlane.f32.xlu0 %v1777
        %v1779 = vpop.xlane.xlu0 %1778
        %v1780 = vadd.f32 %v1772, %v1773
        %v1781 = vsel %vm1662, %v1774, 0.0
        %v1782 = vadd.f32 %v1780, %v1781
        %1783 = vadd.xlane.f32.xlu0 %v1782
        %v1784 = vpop.xlane.xlu0 %1783
        %1785 = vmatprep.subr.mxu0 0.0
        %1786 = vmatpush1.msra.mxu0 %v1779
        %1787 = vmatprep.subr.mxu0 0.0
        %1788 = vmatpush1.msra.mxu0 %v1784
        %1789 = vmatprep.subr.mxu0 0.0
        %1790 = vmatpush1.msra.mxu0 0.0
        %1791 = vmatprep.subr.mxu0 0.0
        %1792 = vmatpush1.msra.mxu0 0.0
        %1793 = vmatprep.subr.mxu0 0.0
        %1794 = vmatpush1.msra.mxu0 0.0
        %1795 = vmatprep.subr.mxu0 0.0
        %1796 = vmatpush1.msra.mxu0 0.0
        %1797 = vmatprep.subr.mxu0 0.0
        %1798 = vmatpush1.msra.mxu0 0.0
        %1799 = vmatprep.subr.mxu0 0.0
        %1800 = vmatpush1.msra.mxu0 0.0
        %1801 = vmatprep.subr.mxu0 0.0
        %1802 = vmatpush1.msra.mxu0 0.0
        %1803 = vmatprep.subr.mxu0 0.0
        %1804 = vmatpush1.msra.mxu0 0.0
        %1805 = vmatprep.subr.mxu0 0.0
        %1806 = vmatpush1.msra.mxu0 0.0
        %1807 = vmatprep.subr.mxu0 0.0
        %1808 = vmatpush1.msra.mxu0 0.0
        %1809 = vmatprep.subr.mxu0 0.0
        %1810 = vmatpush1.msra.mxu0 0.0
        %1811 = vmatprep.subr.mxu0 0.0
        %1812 = vmatpush1.msra.mxu0 0.0
        %1813 = vmatprep.subr.mxu0 0.0
        %1814 = vmatpush1.msra.mxu0 0.0
        %1815 = vmatprep.subr.mxu0 0.0
        %1816 = vmatpush1.msra.mxu0 0.0
        %1817 = vmatprep.subr.mxu0 0.0
        %1818 = vmatpush1.msra.mxu0 0.0
        %1819 = vmatprep.subr.mxu0 0.0
        %1820 = vmatpush1.msra.mxu0 0.0
        %1821 = vmatprep.subr.mxu0 0.0
        %1822 = vmatpush1.msra.mxu0 0.0
        %1823 = vmatprep.subr.mxu0 0.0
        %1824 = vmatpush1.msra.mxu0 0.0
        %1825 = vmatprep.subr.mxu0 0.0
        %1826 = vmatpush1.msra.mxu0 0.0
        %1827 = vmatprep.subr.mxu0 0.0
        %1828 = vmatpush1.msra.mxu0 0.0
        %1829 = vmatprep.subr.mxu0 0.0
        %1830 = vmatpush1.msra.mxu0 0.0
        %1831 = vmatprep.subr.mxu0 0.0
        %1832 = vmatpush1.msra.mxu0 0.0
        %1833 = vmatprep.subr.mxu0 0.0
        %1834 = vmatpush1.msra.mxu0 0.0
        %1835 = vmatprep.subr.mxu0 0.0
        %1836 = vmatpush1.msra.mxu0 0.0
        %1837 = vmatprep.subr.mxu0 0.0
        %1838 = vmatpush1.msra.mxu0 0.0
        %1839 = vmatprep.subr.mxu0 0.0
        %1840 = vmatpush1.msra.mxu0 0.0
        %1841 = vmatprep.subr.mxu0 0.0
        %1842 = vmatpush1.msra.mxu0 0.0
        %1843 = vmatprep.subr.mxu0 0.0
        %1844 = vmatpush1.msra.mxu0 0.0
        %1845 = vmatprep.subr.mxu0 0.0
        %1846 = vmatpush1.msra.mxu0 0.0
        %1847 = vmatprep.subr.mxu0 0.0
        %1848 = vmatpush1.msra.mxu0 0.0
        %1849 = vmatprep.mubr.f32.mxu0 0.0
        %1850 = vmatmul.mubr.f32.gmra.mrb[0].mxu0 %v890
        %v1851 = vpop.f32.mrb[0].mxu0
        %v1852 = vadd.f32 1e-05, %v1851
        %v1853 = vpop.f32.mrb[0].mxu0
        %1854 = vmatprep.mubr.f32.mxu0 0.0
        %1855 = vmatmul.mubr.f32.gmra.mrb[0].mxu0 %v893
        %v1856 = vpop.f32.mrb[0].mxu0
        %v1857 = vadd.f32 1e-05, %v1856
        %v1858 = vpop.f32.mrb[0].mxu0
        %1859 = vdwg.mxu0
        %v1860 = vrsqrt.pop %v1852
        %v1861 = vrsqrt.pop %v1857
        %1863 = vset.pattern.permute.xlu0 0
        %1864 = vperm.xlu0 %1863, %v1860
        %v1865 = vpop.permute.xlu0 %1864
        %1868 = vset.pattern.permute.xlu0 0
        %1869 = vperm.xlu0 %1868, %v1861
        %v1870 = vpop.permute.xlu0 %1869
        %v1872 = vmul.f32 %v1757, %v1865
        %v1873 = vmul.f32 %v1758, %v1865
        %v1874 = vmul.f32 %v1759, %v1865
        %v1875 = vmul.f32 %v1760, %v1870
        %v1876 = vmul.f32 %v1761, %v1870
        %v1877 = vmul.f32 %v1762, %v1870
        %1879 = vset.pattern.permute.xlu0 0
        %1880 = vperm.xlu0 %1879, %v1635
        %v1881 = vpop.permute.xlu0 %1880
        %1884 = vset.pattern.permute.xlu0 0
        %1885 = vperm.xlu0 %1884, %v1636
        %v1886 = vpop.permute.xlu0 %1885
        %v1888 = vmul.f32 %v1872, %v1881
        %v1889 = vmul.f32 %v1873, %v1881
        %v1890 = vmul.f32 %v1874, %v1881
        %v1891 = vmul.f32 %v1875, %v1886
        %v1892 = vmul.f32 %v1876, %v1886
        %v1893 = vmul.f32 %v1877, %v1886
        %1895 = vset.pattern.permute.xlu0 0
        %1896 = vperm.xlu0 %1895, %v1637
        %v1897 = vpop.permute.xlu0 %1896
        %1900 = vset.pattern.permute.xlu0 0
        %1901 = vperm.xlu0 %1900, %v1638
        %v1902 = vpop.permute.xlu0 %1901
        %v1904 = vadd.f32 %v1888, %v1897
        %v1905 = vadd.f32 %v1889, %v1897
        %v1906 = vadd.f32 %v1890, %v1897
        %v1907 = vadd.f32 %v1891, %v1902
        %v1908 = vadd.f32 %v1892, %v1902
        %v1909 = vadd.f32 %v1893, %v1902
        %v1910 = vmax.f32 %v1904, 0.0
        %v1911 = vmax.f32 %v1905, 0.0
        %v1912 = vmax.f32 %v1906, 0.0
        %v1913 = vmax.f32 %v1907, 0.0
        %v1914 = vmax.f32 %v1908, 0.0
        %v1915 = vmax.f32 %v1909, 0.0
        %v1916 = vld [vmem:[%s14] sm:$0xf]
        %v1917 = vld [vmem:[%s14 + $0x4] sm:$0xf]
        %v1918 = vpack.c.bf16 %v561, %v561
        %v1919 = vpack.c.bf16 %v562, %v562
        %v1920 = vpack.c.bf16 %v563, %v563
        %v1921 = vld [vmem:[%s15] sm:$0xff]
        %v1922 = vld [vmem:[%s15 + $0x8] sm:$0xff]
        %1924 = vset.pattern.permute.xlu0 0
        %1925 = vperm.xlu0 %1924, %v1921
        %v1926 = vpop.permute.xlu0 %1925
        %1929 = vset.pattern.permute.xlu0 0
        %1930 = vperm.xlu0 %1929, %v1922
        %v1931 = vpop.permute.xlu0 %1930
        %v1935 = vunpack.c.l.b16 %v1916
        %v1936 = vunpack.c.l.b16 %v1917
        %v1937 = vpack.c.b16 %v1936, %v1935
        %1941 = vrot.lane.b32.xlu0 %v1918, 67
        %v1942 = vpop.permute.xlu0 %1941
        %1943 = vrot.lane.b32.xlu0 %v1919, 67
        %v1944 = vpop.permute.xlu0 %1943
        %1945 = vrot.lane.b32.xlu0 %v1920, 67
        %v1946 = vpop.permute.xlu0 %1945
        %vm1947 = vcmask 547840
        %v1948 = vsel %vm1947, %v1942, %v1944
        %v1949 = vsel %vm1947, %v1944, %v1946
        %vm1950 = vcmask 64512
        %v1952 = vsel %vm1950, %v1937, 0
        %v1955 = vsel %vm744, %v1948, 0
        %v1958 = vsel %vm744, %v1949, 0
        %v1961 = vsel %vm744, %v1946, 0
        %1963 = vmatprep.subr.bf16.mxu0 %v1958
        %1964 = vmatpush1.bf16.msra.mxu0 %v1955
        %1965 = vmatprep.subr.bf16.mxu0 0
        %1966 = vmatpush1.bf16.msra.mxu0 0
        %1967 = vmatprep.subr.bf16.mxu0 0
        %1968 = vmatpush1.bf16.msra.mxu0 0
        %1969 = vmatprep.subr.bf16.mxu0 0
        %1970 = vmatpush1.bf16.msra.mxu0 0
        %1971 = vmatprep.subr.bf16.mxu0 0
        %1972 = vmatpush1.bf16.msra.mxu0 0
        %1973 = vmatprep.subr.bf16.mxu0 0
        %1974 = vmatpush1.bf16.msra.mxu0 0
        %1975 = vmatprep.subr.bf16.mxu0 0
        %1976 = vmatpush1.bf16.msra.mxu0 0
        %1977 = vmatprep.subr.bf16.mxu0 0
        %1978 = vmatpush1.bf16.msra.mxu0 0
        %1979 = vmatprep.subr.bf16.mxu0 0
        %1980 = vmatpush1.bf16.msra.mxu0 0
        %1981 = vmatprep.subr.bf16.mxu0 0
        %1982 = vmatpush1.bf16.msra.mxu0 0
        %1983 = vmatprep.subr.bf16.mxu0 0
        %1984 = vmatpush1.bf16.msra.mxu0 0
        %1985 = vmatprep.subr.bf16.mxu0 0
        %1986 = vmatpush1.bf16.msra.mxu0 0
        %1987 = vmatprep.subr.bf16.mxu0 0
        %1988 = vmatpush1.bf16.msra.mxu0 0
        %1989 = vmatprep.subr.bf16.mxu0 0
        %1990 = vmatpush1.bf16.msra.mxu0 0
        %1991 = vmatprep.subr.bf16.mxu0 0
        %1992 = vmatpush1.bf16.msra.mxu0 0
        %1993 = vmatprep.subr.bf16.mxu0 0
        %1994 = vmatpush1.bf16.msra.mxu0 0
        %1995 = vmatprep.mubr.bf16.mxu0 0
        %1996 = vmatmul.mubr.bf16.gmra.mrb[0].mxu0 %v1952
        %v1997 = vpop.f32.mrb[0].mxu0
        %v1998 = vadd.f32 %v1926, %v1997
        %v1999 = vpop.f32.mrb[0].mxu0
        %v2000 = vadd.f32 %v1926, %v1999
        %v2001 = vpop.f32.mrb[0].mxu0
        %v2002 = vadd.f32 %v1931, %v2001
        %v2003 = vpop.f32.mrb[0].mxu0
        %v2004 = vadd.f32 %v1931, %v2003
        %2005 = vdwg.mxu0
        %2006 = vmatprep.subr.bf16.mxu0 0
        %2007 = vmatpush1.bf16.msra.mxu0 %v1961
        %2008 = vmatprep.subr.bf16.mxu0 0
        %2009 = vmatpush1.bf16.msra.mxu0 0
        %2010 = vmatprep.subr.bf16.mxu0 0
        %2011 = vmatpush1.bf16.msra.mxu0 0
        %2012 = vmatprep.subr.bf16.mxu0 0
        %2013 = vmatpush1.bf16.msra.mxu0 0
        %2014 = vmatprep.subr.bf16.mxu0 0
        %2015 = vmatpush1.bf16.msra.mxu0 0
        %2016 = vmatprep.subr.bf16.mxu0 0
        %2017 = vmatpush1.bf16.msra.mxu0 0
        %2018 = vmatprep.subr.bf16.mxu0 0
        %2019 = vmatpush1.bf16.msra.mxu0 0
        %2020 = vmatprep.subr.bf16.mxu0 0
        %2021 = vmatpush1.bf16.msra.mxu0 0
        %2022 = vmatprep.subr.bf16.mxu0 0
        %2023 = vmatpush1.bf16.msra.mxu0 0
        %2024 = vmatprep.subr.bf16.mxu0 0
        %2025 = vmatpush1.bf16.msra.mxu0 0
        %2026 = vmatprep.subr.bf16.mxu0 0
        %2027 = vmatpush1.bf16.msra.mxu0 0
        %2028 = vmatprep.subr.bf16.mxu0 0
        %2029 = vmatpush1.bf16.msra.mxu0 0
        %2030 = vmatprep.subr.bf16.mxu0 0
        %2031 = vmatpush1.bf16.msra.mxu0 0
        %2032 = vmatprep.subr.bf16.mxu0 0
        %2033 = vmatpush1.bf16.msra.mxu0 0
        %2034 = vmatprep.subr.bf16.mxu0 0
        %2035 = vmatpush1.bf16.msra.mxu0 0
        %2036 = vmatprep.subr.bf16.mxu0 0
        %2037 = vmatpush1.bf16.msra.mxu0 0
        %2038 = vmatprep.mubr.bf16.mxu0 0
        %2039 = vmatmul.mubr.bf16.gmra.mrb[0].mxu0 %v1952
        %v2040 = vpop.f32.mrb[0].mxu0
        %v2041 = vadd.f32 %v1926, %v2040
        %v2042 = vpop.f32.mrb[0].mxu0
        %v2043 = vpop.f32.mrb[0].mxu0
        %v2044 = vadd.f32 %v1931, %v2043
        %v2045 = vpop.f32.mrb[0].mxu0
        %2046 = vdwg.mxu0
        %v2047 = vadd.f32 %v1910, %v1998
        %v2048 = vadd.f32 %v1911, %v2000
        %v2049 = vadd.f32 %v1912, %v2041
        %v2050 = vadd.f32 %v1913, %v2002
        %v2051 = vadd.f32 %v1914, %v2004
        %v2052 = vadd.f32 %v1915, %v2044
        %2053 = vst [vmem:[%s544] sm:$0xff] %v2047
        %2054 = vst [vmem:[%s544 + $0x8] sm:$0xff] %v2048
        %2055 = vst.msk [vmem:[%s544 + $0x10] sm:$0xff] %vm1662, %v2049
        %2056 = vst [vmem:[%s544 + $0x18] sm:$0xff] %v2050
        %2057 = vst [vmem:[%s544 + $0x20] sm:$0xff] %v2051
        %2058 = vst.msk [vmem:[%s544 + $0x28] sm:$0xff] %vm1662, %v2052
        %s2059 = sand.u32 %s389, 1
        %s2060 = scalar_lea.sflag [#allocation3], %s2059
        %s2061 = sand.u32 %s389, 1
        %s2062 = smul.addr %s2061, 48
        %s2063 = scalar_lea.vmem [#allocation2], %s2062
        // Predicated region
        $region85: #{tpu_custom_call.1} parent=83 // pred_check
          %p2064 = pneg %p399
        $region86: #{tpu_custom_call.1} parent=83 // pred_check_branch
          %2066 = sbr.rel (%p2064) target = $region88
        $region87: #{tpu_custom_call.1} parent=83 // pred_region
          %s2068 = ssub.s32 768, 768
          %2069 = vsyncadd %s2060, %s2068
          %s2070 = smul.addr %s30, 6
          %s2071 = smul.addr %s2070, 128
          %s2072 = scalar_lea.hbm %s16, %s2071
          %s2073 = sshll.u32 %s2063, 4
          %s2074 = int_to_ptr.vmem [resolvable:$true] %s2073
          %2079 = dma.vmem_to_hbm [thread:$0]  %s2074, 768, %s2072, %s2060, 384, 384, 24
        $region88: #{tpu_custom_call.1} parent=83 // pred_fallthru
          _
      $region84: #{tpu_custom_call.1} parent=5 // pred_fallthru
        _
      %p2080 = scmp.le.s32.totalorder 2, %s25
      // Predicated region
      $region89: #{tpu_custom_call.1} parent=5 // pred_check
        %p2081 = pneg %p2080
      $region90: #{tpu_custom_call.1} parent=5 // pred_check_branch
        %2083 = sbr.rel (%p2081) target = $region92
      $region91: #{tpu_custom_call.1} parent=5 // pred_region
        %s2084 = ssub.s32 %s25, 2
        // Predicated region
        $region93: #{tpu_custom_call.1} parent=91 // pred_check
          %p2085 = pneg %p405
        $region94: #{tpu_custom_call.1} parent=91 // pred_check_branch
          %2087 = sbr.rel (%p2085) target = $region96
        $region95: #{tpu_custom_call.1} parent=91 // pred_region
          %s2088 = sand.u32 %s390, 1
          %s2089 = scalar_lea.sflag [#allocation3], %s2088
          %s2090 = sand.u32 %s390, 1
          %s2091 = smul.addr %s2090, 48
          %s2092 = scalar_lea.vmem [#allocation2], %s2091
          %2093 = dma.done %s2089, 768
        $region96: #{tpu_custom_call.1} parent=91 // pred_fallthru
          _
      $region92: #{tpu_custom_call.1} parent=5 // pred_fallthru
        _
    $region6: #{tpu_custom_call.1} parent=1 // loop_footer
      %s29 = sadd.s32 1, %s25
    $region7: #{tpu_custom_call.1} parent=1 // loop_footer_branch
      %24 = sbr.rel target = $region3
    $region8: #{tpu_custom_call.1} parent=1 // loop_exit
      _
    %2094 = vsyncpa [#allocation3], 1
    %s2095 = scalar_lea.sflag [#allocation3], 1
    %2096 = vsyncpa %s2095, 1

</llo_original>
